<compile_context>
chip_gen: v5e
topology: v5e:2x2
jax: 0.10.0
libtpu: 0.0.40
codegen_flags: <defaults>
</compile_context>

<pallas_src>
import jax
import jax.numpy as jnp
from jax import lax
from jax.experimental import pallas as pl
from jax.experimental.pallas import tpu as pltpu


def _bmm_kernel(a_ref, b_ref, o_ref):
    # a_ref: (BH_TILE, K, M)  -- transposed (lane-dense) LHS
    # b_ref: (BH_TILE, K, N)
    # o_ref: (BH_TILE, M, N)
    out = lax.dot_general(
        a_ref[...],
        b_ref[...],
        dimension_numbers=(((1,), (1,)), ((0,), (0,))),  # contract K, batch over heads
        preferred_element_type=jnp.float32,
    )
    o_ref[...] = out.astype(o_ref.dtype)


def batched_matmul(x382: jax.Array, x383: jax.Array, *, bh_tile: int = 2) -> jax.Array:
    """torch.matmul semantics for 4-D inputs with matching batch dims."""
    B, H, M, K = x382.shape
    B2, H2, K2, N = x383.shape
    assert (B, H) == (B2, H2) and K == K2

    BH = B * H
    # Pick a tile that divides the flattened batch*head extent.
    while BH % bh_tile != 0:
        bh_tile -= 1
    grid = (BH // bh_tile,)

    # Lane-dense LHS: (BH, K, M) so the last (lane) dim is M=384 (3 full 128-lane
    # tiles) instead of K=64 (half-empty vregs).
    a = jnp.transpose(x382.reshape(BH, M, K), (0, 2, 1))
    b = x383.reshape(BH, K, N)

    out = pl.pallas_call(
        _bmm_kernel,
        out_shape=jax.ShapeDtypeStruct((BH, M, N), x382.dtype),
        grid_spec=pltpu.PrefetchScalarGridSpec(
            num_scalar_prefetch=0,
            grid=grid,
            in_specs=[
                pl.BlockSpec((bh_tile, K, M), lambda i: (i, 0, 0)),
                pl.BlockSpec((bh_tile, K, N), lambda i: (i, 0, 0)),
            ],
            out_specs=pl.BlockSpec((bh_tile, M, N), lambda i: (i, 0, 0)),
        ),
        compiler_params=pltpu.CompilerParams(
            dimension_semantics=("parallel",),
        ),
    )(a, b)

    return out.reshape(B, H, M, N)


if __name__ == "__main__":
    key = jax.random.PRNGKey(0)
    k1, k2 = jax.random.split(key)

    # Shapes implied by the module's forward (torch.randn sizes).
    x382 = jax.random.normal(k1, (1, 12, 384, 64), dtype=jnp.float32)
    x383 = jax.random.normal(k2, (1, 12, 64, 384), dtype=jnp.float32)

    out = batched_matmul(x382, x383)
    out = jax.block_until_ready(out)

    # Correctness check against plain-JAX reference.
    ref = jnp.matmul(x382, x383)
    assert out.shape == (1, 12, 384, 384)
    assert jnp.allclose(out, ref, atol=1e-4, rtol=1e-4)

    print("KERNEL_OK")
</pallas_src>

<mosaic_0001>
module attributes {stable_mosaic.version = 11 : i64} {
  func.func @_bmm_kernel(%arg0: i32, %arg1: memref<2x64x384xf32, #tpu.memory_space<vmem>>, %arg2: memref<2x64x384xf32, #tpu.memory_space<vmem>>, %arg3: memref<2x384x384xf32, #tpu.memory_space<vmem>>) attributes {dimension_semantics = [#tpu.dimension_semantics<parallel>], iteration_bounds = array<i64: 6>, scalar_prefetch = 0 : i64, scratch_operands = 0 : i64, tpu.core_type = #tpu.core_type<tc>, window_params = [{transform_indices = @transform_0, window_bounds = array<i64: 2, 64, 384>}, {transform_indices = @transform_1, window_bounds = array<i64: 2, 64, 384>}, {transform_indices = @transform_2, window_bounds = array<i64: 2, 384, 384>}]} {
    %c0 = arith.constant 0 : index
    %c0_0 = arith.constant 0 : index
    %c0_1 = arith.constant 0 : index
    %0 = vector.load %arg1[%c0, %c0_0, %c0_1] : memref<2x64x384xf32, #tpu.memory_space<vmem>>, vector<2x64x384xf32>
    %c0_2 = arith.constant 0 : index
    %c0_3 = arith.constant 0 : index
    %c0_4 = arith.constant 0 : index
    %1 = vector.load %arg2[%c0_2, %c0_3, %c0_4] : memref<2x64x384xf32, #tpu.memory_space<vmem>>, vector<2x64x384xf32>
    %cst = arith.constant dense<0.000000e+00> : vector<2x384x384xf32>
    %2 = tpu.matmul %0, %1, %cst {dimension_numbers = #tpu.dot_dimension_numbers<[1], [1], [2], [2], [0, 0, 0, 2, 1, 2], [0], [0]>} : vector<2x64x384xf32>, vector<2x64x384xf32>, vector<2x384x384xf32> -> vector<2x384x384xf32>
    %c0_5 = arith.constant 0 : index
    %c0_6 = arith.constant 0 : index
    %c0_7 = arith.constant 0 : index
    %3 = vector.load %arg3[%c0_5, %c0_6, %c0_7] : memref<2x384x384xf32, #tpu.memory_space<vmem>>, vector<2x384x384xf32>
    tpu.vector_store %arg3[%c0_5, %c0_6, %c0_7], %2 {strides = array<i32>} : memref<2x384x384xf32, #tpu.memory_space<vmem>>, vector<2x384x384xf32>,
    return
  }
  func.func @transform_0(%arg0: i32) -> (i32, i32, i32) {
    %c0_i32 = arith.constant 0 : i32
    %c0_i32_0 = arith.constant 0 : i32
    %c0_i32_1 = arith.constant 0 : i32
    return %arg0, %c0_i32, %c0_i32_0 : i32, i32, i32
  }
  func.func @transform_1(%arg0: i32) -> (i32, i32, i32) {
    %c0_i32 = arith.constant 0 : i32
    %c0_i32_0 = arith.constant 0 : i32
    %c0_i32_1 = arith.constant 0 : i32
    return %arg0, %c0_i32, %c0_i32_0 : i32, i32, i32
  }
  func.func @transform_2(%arg0: i32) -> (i32, i32, i32) {
    %c0_i32 = arith.constant 0 : i32
    %c0_i32_0 = arith.constant 0 : i32
    %c0_i32_1 = arith.constant 0 : i32
    return %arg0, %c0_i32, %c0_i32_0 : i32, i32, i32
  }
}

</mosaic_0001>

<llo_original>
// kernel: tpu_custom_call.1
$region0: #{tpu_custom_call.1}
  #allocation0 [shape = 'u32[]', space=smem, size = 0x4, offset = 0x4, fixed_abs, tag = 'smem constant byte address 0x4 - core index']
  #allocation1 [shape = 'u32[72,128]{1,0:T(1,128)}', space=vmem, size = 0x9000, scoped, tag = 'internal scratch']
  %s0 = inlined_call_operand.hbm [shape: f32[12,64,384], index: 0, kind: input, shape index: {}]
  %s1 = inlined_call_operand.hbm [shape: f32[12,64,384], index: 1, kind: input, shape index: {}]
  %s2 = inlined_call_operand.hbm [shape: f32[12,384,384], index: 2, kind: output, shape index: {}]
  %s3 = sld [smem:[#allocation0]]
  $region49: #{tpu_custom_call.1} parent=0
    _
  %s5 = ssub.s32 1, %s3
  %s6 = scalar_select 0, %s5, %s3
  $region1: #{tpu_custom_call.1} parent=0
    #allocation2 [shape = 'u8[393216]{0}', space=vmem, size = 0x60000, scoped, tag = 'input window, operand 0']
    #allocation3 [shape = 's32[2]{0}', space=sflag, size = 0x8, scoped, tag = 'scoped memory for tpu_custom_call.1']
    #allocation4 [shape = 's32[2]{0}', space=sflag, size = 0x8, scoped, tag = 'scoped memory for tpu_custom_call.1']
    #allocation5 [shape = 'u8[393216]{0}', space=vmem, size = 0x60000, scoped, tag = 'input window, operand 1']
    #allocation6 [shape = 's32[2]{0}', space=sflag, size = 0x8, scoped, tag = 'scoped memory for tpu_custom_call.1']
    #allocation7 [shape = 'u8[2359296]{0}', space=vmem, size = 0x240000, scoped, tag = 'output window, operand 0']
    %7 = vsyncpa [#allocation3], 0
    %s8 = scalar_lea.sflag [#allocation3], 1
    %9 = vsyncpa %s8, 0
    %10 = vsyncpa [#allocation6], 0
    %s11 = scalar_lea.sflag [#allocation6], 1
    %12 = vsyncpa %s11, 0
    %13 = vsyncpa [#allocation4], 0
    %s14 = scalar_lea.sflag [#allocation4], 1
    %15 = vsyncpa %s14, 0
    loop: start=0, step=1, limit=8
    $region2: #{tpu_custom_call.1} parent=1 // loop_pre_header
      _
    $region3: #{tpu_custom_call.1} parent=1 // loop_header
      %s17 = sphi 0, %s21
      %p18 = scmp.ge.s32.totalorder %s17, 8
      %s27 = sphi 0, %s29
      %s30 = sphi 0, %s27
      %s31 = sphi 0, %s30
      %s47 = sphi 0, %s31
      %s53 = sphi 0, %s55
      %s56 = sphi 0, %s53
      %s57 = sphi 0, %s56
      %s73 = sphi 0, %s57
      %s79 = sphi 0, %s81
      %s82 = sphi 0, %s79
      %s83 = sphi 0, %s82
      %s99 = sphi 0, %s83
    $region4: #{tpu_custom_call.1} parent=1 // loop_header_branch
      %20 = sbr.rel (%p18) target = $region8
    $region5: #{tpu_custom_call.1} parent=1 // loop_body
      %s22 = ssub.s32 %s17, 1
      %s23 = ssub.s32 %s17, 2
      %s24 = sadd.s32 %s17, 1
      %s25 = ssub.s32 %s17, %s24
      %p26 = scmp.eq.s32.totalorder %s25, 0
      %s28 = sadd.s32 %s27, 1
      %s29 = scalar_select %p26, %s27, %s28
      %p32 = pneg %p26
      %p33 = scmp.eq.s32.totalorder %s17, 5
      %p34 = por %p32, %p33
      %p35 = scmp.ne.s32.totalorder %s27, %s30
      %p36 = scmp.eq.s32.totalorder %s17, 0
      %p37 = por %p35, %p36
      %p38 = scmp.ne.s32.totalorder %s27, %s30
      %p39 = scmp.eq.s32.totalorder %s22, 5
      %p40 = por %p38, %p39
      %p41 = scmp.ne.s32.totalorder %s30, %s31
      %p42 = scmp.eq.s32.totalorder %s22, 0
      %p43 = por %p41, %p42
      %p44 = scmp.ne.s32.totalorder %s30, %s31
      %p45 = scmp.eq.s32.totalorder %s23, 5
      %p46 = por %p44, %p45
      %p48 = scmp.ne.s32.totalorder %s31, %s47
      %p49 = scmp.eq.s32.totalorder %s23, 0
      %p50 = por %p48, %p49
      %s51 = ssub.s32 %s17, %s24
      %p52 = scmp.eq.s32.totalorder %s51, 0
      %s54 = sadd.s32 %s53, 1
      %s55 = scalar_select %p52, %s53, %s54
      %p58 = pneg %p52
      %p59 = scmp.eq.s32.totalorder %s17, 5
      %p60 = por %p58, %p59
      %p61 = scmp.ne.s32.totalorder %s53, %s56
      %p62 = scmp.eq.s32.totalorder %s17, 0
      %p63 = por %p61, %p62
      %p64 = scmp.ne.s32.totalorder %s53, %s56
      %p65 = scmp.eq.s32.totalorder %s22, 5
      %p66 = por %p64, %p65
      %p67 = scmp.ne.s32.totalorder %s56, %s57
      %p68 = scmp.eq.s32.totalorder %s22, 0
      %p69 = por %p67, %p68
      %p70 = scmp.ne.s32.totalorder %s56, %s57
      %p71 = scmp.eq.s32.totalorder %s23, 5
      %p72 = por %p70, %p71
      %p74 = scmp.ne.s32.totalorder %s57, %s73
      %p75 = scmp.eq.s32.totalorder %s23, 0
      %p76 = por %p74, %p75
      %s77 = ssub.s32 %s17, %s24
      %p78 = scmp.eq.s32.totalorder %s77, 0
      %s80 = sadd.s32 %s79, 1
      %s81 = scalar_select %p78, %s79, %s80
      %p84 = pneg %p78
      %p85 = scmp.eq.s32.totalorder %s17, 5
      %p86 = por %p84, %p85
      %p87 = scmp.ne.s32.totalorder %s79, %s82
      %p88 = scmp.eq.s32.totalorder %s17, 0
      %p89 = por %p87, %p88
      %p90 = scmp.ne.s32.totalorder %s79, %s82
      %p91 = scmp.eq.s32.totalorder %s22, 5
      %p92 = por %p90, %p91
      %p93 = scmp.ne.s32.totalorder %s82, %s83
      %p94 = scmp.eq.s32.totalorder %s22, 0
      %p95 = por %p93, %p94
      %p96 = scmp.ne.s32.totalorder %s82, %s83
      %p97 = scmp.eq.s32.totalorder %s23, 5
      %p98 = por %p96, %p97
      %p100 = scmp.ne.s32.totalorder %s83, %s99
      %p101 = scmp.eq.s32.totalorder %s23, 0
      %p102 = por %p100, %p101
      %p103 = scmp.le.s32.totalorder 1, %s17
      %p104 = scmp.lt.s32.totalorder %s17, 7
      %p105 = pnand %p103, %p104
      %p106 = pneg %p105
      // Predicated region
      $region9: #{tpu_custom_call.1} parent=5 // pred_check
        _
      $region10: #{tpu_custom_call.1} parent=5 // pred_check_branch
        %108 = sbr.rel (%p105) target = $region12
      $region11: #{tpu_custom_call.1} parent=5 // pred_region
        %s109 = ssub.s32 %s17, 1
      $region12: #{tpu_custom_call.1} parent=5 // pred_fallthru
        _
      %p110 = scmp.lt.s32.totalorder %s17, 6
      // Predicated region
      $region13: #{tpu_custom_call.1} parent=5 // pred_check
        %p111 = pneg %p110
      $region14: #{tpu_custom_call.1} parent=5 // pred_check_branch
        %113 = sbr.rel (%p111) target = $region16
      $region15: #{tpu_custom_call.1} parent=5 // pred_region
        // Predicated region
        $region17: #{tpu_custom_call.1} parent=15 // pred_check
          %p114 = pneg %p37
        $region18: #{tpu_custom_call.1} parent=15 // pred_check_branch
          %116 = sbr.rel (%p114) target = $region20
        $region19: #{tpu_custom_call.1} parent=15 // pred_region
          %s117 = sand.u32 %s27, 1
          %s118 = scalar_lea.sflag [#allocation3], %s117
          %s119 = sand.u32 %s27, 1
          %s120 = smul.addr %s119, 384
          %s121 = scalar_lea.vmem [#allocation2], %s120
          %s122 = smul.u32 2, %s17
          %124 = vsyncadd %s118, 0
          %s125 = smul.addr %s122, 24
          %s126 = smul.addr %s125, 8
          %s127 = scalar_lea.hbm %s0, %s126
          %s128 = sshll.u32 %s127, 4
          %s129 = int_to_ptr.hbm [resolvable:$true] %s128
          %s130 = sshll.u32 %s121, 4
          %s131 = int_to_ptr.vmem [resolvable:$true] %s130
          %136 = dma.hbm_to_vmem [thread:$0]  %s129, 6144, %s131, %s118, 384, 384, 24
        $region20: #{tpu_custom_call.1} parent=15 // pred_fallthru
          _
        // Predicated region
        $region21: #{tpu_custom_call.1} parent=15 // pred_check
          %p137 = pneg %p63
        $region22: #{tpu_custom_call.1} parent=15 // pred_check_branch
          %139 = sbr.rel (%p137) target = $region24
        $region23: #{tpu_custom_call.1} parent=15 // pred_region
          %s140 = sand.u32 %s53, 1
          %s141 = scalar_lea.sflag [#allocation6], %s140
          %s142 = sand.u32 %s53, 1
          %s143 = smul.addr %s142, 384
          %s144 = scalar_lea.vmem [#allocation5], %s143
          %s145 = smul.u32 2, %s17
          %147 = vsyncadd %s141, 0
          %s148 = smul.addr %s145, 24
          %s149 = smul.addr %s148, 8
          %s150 = scalar_lea.hbm %s1, %s149
          %s151 = sshll.u32 %s150, 4
          %s152 = int_to_ptr.hbm [resolvable:$true] %s151
          %s153 = sshll.u32 %s144, 4
          %s154 = int_to_ptr.vmem [resolvable:$true] %s153
          %159 = dma.hbm_to_vmem [thread:$0]  %s152, 6144, %s154, %s141, 384, 384, 24
        $region24: #{tpu_custom_call.1} parent=15 // pred_fallthru
          _
      $region16: #{tpu_custom_call.1} parent=5 // pred_fallthru
        _
      %p160 = scmp.le.s32.totalorder 1, %s17
      %p161 = scmp.lt.s32.totalorder %s17, 7
      %p162 = pnand %p160, %p161
      %p163 = pneg %p162
      // Predicated region
      $region25: #{tpu_custom_call.1} parent=5 // pred_check
        _
      $region26: #{tpu_custom_call.1} parent=5 // pred_check_branch
        %165 = sbr.rel (%p162) target = $region28
      $region27: #{tpu_custom_call.1} parent=5 // pred_region
        %s166 = ssub.s32 %s17, 1
        %s167 = sand.u32 %s30, 1
        %s168 = scalar_lea.sflag [#allocation3], %s167
        %s169 = sand.u32 %s30, 1
        %s170 = smul.addr %s169, 384
        %s171 = scalar_lea.vmem [#allocation2], %s170
        // Predicated region
        $region29: #{tpu_custom_call.1} parent=27 // pred_check
          %p172 = pneg %p43
        $region30: #{tpu_custom_call.1} parent=27 // pred_check_branch
          %174 = sbr.rel (%p172) target = $region32
        $region31: #{tpu_custom_call.1} parent=27 // pred_region
          %176 = dma.done %s168, 6144
        $region32: #{tpu_custom_call.1} parent=27 // pred_fallthru
          _
        %s177 = sand.u32 %s56, 1
        %s178 = scalar_lea.sflag [#allocation6], %s177
        %s179 = sand.u32 %s56, 1
        %s180 = smul.addr %s179, 384
        %s181 = scalar_lea.vmem [#allocation5], %s180
        // Predicated region
        $region33: #{tpu_custom_call.1} parent=27 // pred_check
          %p182 = pneg %p69
        $region34: #{tpu_custom_call.1} parent=27 // pred_check_branch
          %184 = sbr.rel (%p182) target = $region36
        $region35: #{tpu_custom_call.1} parent=27 // pred_region
          %186 = dma.done %s178, 6144
        $region36: #{tpu_custom_call.1} parent=27 // pred_fallthru
          _
        %s187 = sand.u32 %s30, 1
        %s188 = scalar_lea.sflag [#allocation3], %s187
        %s189 = sand.u32 %s30, 1
        %s190 = smul.addr %s189, 384
        %s191 = scalar_lea.vmem [#allocation2], %s190
        %p192 = pneg %p43
        %p193 = pneg %p40
        %s194 = sand.u32 %s56, 1
        %s195 = scalar_lea.sflag [#allocation6], %s194
        %s196 = sand.u32 %s56, 1
        %s197 = smul.addr %s196, 384
        %s198 = scalar_lea.vmem [#allocation5], %s197
        %p199 = pneg %p69
        %p200 = pneg %p66
        %p201 = pneg %p95
        %p202 = pneg %p92
        %s203 = sand.u32 %s82, 1
        %s204 = scalar_lea.sflag [#allocation4], %s203
        %s205 = sand.u32 %s82, 1
        %s206 = smul.addr %s205, 2304
        %s207 = scalar_lea.vmem [#allocation7], %s206
        %s208 = smul.u32 2, %s22
        %s209 = smul.u32 2, %s22
        %s210 = smul.u32 2, %s22
        %v211 = vld [vmem:[%s171] sm:$0xff]
        %v212 = vld [vmem:[%s171 + $0x8] sm:$0xff]
        %v213 = vld [vmem:[%s171 + $0x10] sm:$0xff]
        %v214 = vld [vmem:[%s171 + $0x18] sm:$0xff]
        %v215 = vld [vmem:[%s171 + $0x20] sm:$0xff]
        %v216 = vld [vmem:[%s171 + $0x28] sm:$0xff]
        %v217 = vld [vmem:[%s171 + $0x30] sm:$0xff]
        %v218 = vld [vmem:[%s171 + $0x38] sm:$0xff]
        %v219 = vld [vmem:[%s171 + $0x40] sm:$0xff]
        %v220 = vld [vmem:[%s171 + $0x48] sm:$0xff]
        %v221 = vld [vmem:[%s171 + $0x50] sm:$0xff]
        %v222 = vld [vmem:[%s171 + $0x58] sm:$0xff]
        %v223 = vld [vmem:[%s171 + $0x60] sm:$0xff]
        %v224 = vld [vmem:[%s171 + $0x68] sm:$0xff]
        %v225 = vld [vmem:[%s171 + $0x70] sm:$0xff]
        %v226 = vld [vmem:[%s171 + $0x78] sm:$0xff]
        %v227 = vld [vmem:[%s171 + $0x80] sm:$0xff]
        %v228 = vld [vmem:[%s171 + $0x88] sm:$0xff]
        %v229 = vld [vmem:[%s171 + $0x90] sm:$0xff]
        %v230 = vld [vmem:[%s171 + $0x98] sm:$0xff]
        %v231 = vld [vmem:[%s171 + $0xa0] sm:$0xff]
        %v232 = vld [vmem:[%s171 + $0xa8] sm:$0xff]
        %v233 = vld [vmem:[%s171 + $0xb0] sm:$0xff]
        %v234 = vld [vmem:[%s171 + $0xb8] sm:$0xff]
        %v235 = vld [vmem:[%s171 + $0xc0] sm:$0xff]
        %v236 = vld [vmem:[%s171 + $0xc8] sm:$0xff]
        %v237 = vld [vmem:[%s171 + $0xd0] sm:$0xff]
        %v238 = vld [vmem:[%s171 + $0xd8] sm:$0xff]
        %v239 = vld [vmem:[%s171 + $0xe0] sm:$0xff]
        %v240 = vld [vmem:[%s171 + $0xe8] sm:$0xff]
        %v241 = vld [vmem:[%s171 + $0xf0] sm:$0xff]
        %v242 = vld [vmem:[%s171 + $0xf8] sm:$0xff]
        %v243 = vld [vmem:[%s171 + $0x100] sm:$0xff]
        %v244 = vld [vmem:[%s171 + $0x108] sm:$0xff]
        %v245 = vld [vmem:[%s171 + $0x110] sm:$0xff]
        %v246 = vld [vmem:[%s171 + $0x118] sm:$0xff]
        %v247 = vld [vmem:[%s171 + $0x120] sm:$0xff]
        %v248 = vld [vmem:[%s171 + $0x128] sm:$0xff]
        %v249 = vld [vmem:[%s171 + $0x130] sm:$0xff]
        %v250 = vld [vmem:[%s171 + $0x138] sm:$0xff]
        %v251 = vld [vmem:[%s171 + $0x140] sm:$0xff]
        %v252 = vld [vmem:[%s171 + $0x148] sm:$0xff]
        %v253 = vld [vmem:[%s171 + $0x150] sm:$0xff]
        %v254 = vld [vmem:[%s171 + $0x158] sm:$0xff]
        %v255 = vld [vmem:[%s171 + $0x160] sm:$0xff]
        %v256 = vld [vmem:[%s171 + $0x168] sm:$0xff]
        %v257 = vld [vmem:[%s171 + $0x170] sm:$0xff]
        %v258 = vld [vmem:[%s171 + $0x178] sm:$0xff]
        %v259 = vld [vmem:[%s181] sm:$0xff]
        %v260 = vld [vmem:[%s181 + $0x8] sm:$0xff]
        %v261 = vld [vmem:[%s181 + $0x10] sm:$0xff]
        %v262 = vld [vmem:[%s181 + $0x18] sm:$0xff]
        %v263 = vld [vmem:[%s181 + $0x20] sm:$0xff]
        %v264 = vld [vmem:[%s181 + $0x28] sm:$0xff]
        %v265 = vld [vmem:[%s181 + $0x30] sm:$0xff]
        %v266 = vld [vmem:[%s181 + $0x38] sm:$0xff]
        %v267 = vld [vmem:[%s181 + $0x40] sm:$0xff]
        %v268 = vld [vmem:[%s181 + $0x48] sm:$0xff]
        %v269 = vld [vmem:[%s181 + $0x50] sm:$0xff]
        %v270 = vld [vmem:[%s181 + $0x58] sm:$0xff]
        %v271 = vld [vmem:[%s181 + $0x60] sm:$0xff]
        %v272 = vld [vmem:[%s181 + $0x68] sm:$0xff]
        %v273 = vld [vmem:[%s181 + $0x70] sm:$0xff]
        %v274 = vld [vmem:[%s181 + $0x78] sm:$0xff]
        %v275 = vld [vmem:[%s181 + $0x80] sm:$0xff]
        %v276 = vld [vmem:[%s181 + $0x88] sm:$0xff]
        %v277 = vld [vmem:[%s181 + $0x90] sm:$0xff]
        %v278 = vld [vmem:[%s181 + $0x98] sm:$0xff]
        %v279 = vld [vmem:[%s181 + $0xa0] sm:$0xff]
        %v280 = vld [vmem:[%s181 + $0xa8] sm:$0xff]
        %v281 = vld [vmem:[%s181 + $0xb0] sm:$0xff]
        %v282 = vld [vmem:[%s181 + $0xb8] sm:$0xff]
        %v283 = vld [vmem:[%s181 + $0xc0] sm:$0xff]
        %v284 = vld [vmem:[%s181 + $0xc8] sm:$0xff]
        %v285 = vld [vmem:[%s181 + $0xd0] sm:$0xff]
        %v286 = vld [vmem:[%s181 + $0xd8] sm:$0xff]
        %v287 = vld [vmem:[%s181 + $0xe0] sm:$0xff]
        %v288 = vld [vmem:[%s181 + $0xe8] sm:$0xff]
        %v289 = vld [vmem:[%s181 + $0xf0] sm:$0xff]
        %v290 = vld [vmem:[%s181 + $0xf8] sm:$0xff]
        %v291 = vld [vmem:[%s181 + $0x100] sm:$0xff]
        %v292 = vld [vmem:[%s181 + $0x108] sm:$0xff]
        %v293 = vld [vmem:[%s181 + $0x110] sm:$0xff]
        %v294 = vld [vmem:[%s181 + $0x118] sm:$0xff]
        %v295 = vld [vmem:[%s181 + $0x120] sm:$0xff]
        %v296 = vld [vmem:[%s181 + $0x128] sm:$0xff]
        %v297 = vld [vmem:[%s181 + $0x130] sm:$0xff]
        %v298 = vld [vmem:[%s181 + $0x138] sm:$0xff]
        %v299 = vld [vmem:[%s181 + $0x140] sm:$0xff]
        %v300 = vld [vmem:[%s181 + $0x148] sm:$0xff]
        %v301 = vld [vmem:[%s181 + $0x150] sm:$0xff]
        %v302 = vld [vmem:[%s181 + $0x158] sm:$0xff]
        %v303 = vld [vmem:[%s181 + $0x160] sm:$0xff]
        %v304 = vld [vmem:[%s181 + $0x168] sm:$0xff]
        %v305 = vld [vmem:[%s181 + $0x170] sm:$0xff]
        %v306 = vld [vmem:[%s181 + $0x178] sm:$0xff]
        %307 = vxpose.xlu0.b32.start [1/16] %v211, 128
        %308 = vxpose.xlu0.b32.cont [2/16] %v214, 128
        %309 = vxpose.xlu0.b32.cont [3/16] %v217, 128
        %310 = vxpose.xlu0.b32.cont [4/16] %v220, 128
        %311 = vxpose.xlu0.b32.cont [5/16] %v223, 128
        %312 = vxpose.xlu0.b32.cont [6/16] %v226, 128
        %313 = vxpose.xlu0.b32.cont [7/16] %v229, 128
        %314 = vxpose.xlu0.b32.cont [8/16] %v232, 128
        %315 = vxpose.xlu0.b32.cont [9/16] 0.0, 128
        %316 = vxpose.xlu0.b32.cont [10/16] 0.0, 128
        %317 = vxpose.xlu0.b32.cont [11/16] 0.0, 128
        %318 = vxpose.xlu0.b32.cont [12/16] 0.0, 128
        %319 = vxpose.xlu0.b32.cont [13/16] 0.0, 128
        %320 = vxpose.xlu0.b32.cont [14/16] 0.0, 128
        %321 = vxpose.xlu0.b32.cont [15/16] 0.0, 128
        %322 = vxpose.xlu0.b32.end [16/16] 0.0, 128
        %v323 = vpop.trf.xlu0
        %v324 = vpop.trf.xlu0
        %v325 = vpop.trf.xlu0
        %v326 = vpop.trf.xlu0
        %v327 = vpop.trf.xlu0
        %v328 = vpop.trf.xlu0
        %v329 = vpop.trf.xlu0
        %v330 = vpop.trf.xlu0
        %v331 = vpop.trf.xlu0
        %v332 = vpop.trf.xlu0
        %v333 = vpop.trf.xlu0
        %v334 = vpop.trf.xlu0
        %v335 = vpop.trf.xlu0
        %v336 = vpop.trf.xlu0
        %v337 = vpop.trf.xlu0
        %v338 = vpop.trf.xlu0
        %339 = vxpose.xlu0.b32.start [1/16] %v212, 128
        %340 = vxpose.xlu0.b32.cont [2/16] %v215, 128
        %341 = vxpose.xlu0.b32.cont [3/16] %v218, 128
        %342 = vxpose.xlu0.b32.cont [4/16] %v221, 128
        %343 = vxpose.xlu0.b32.cont [5/16] %v224, 128
        %344 = vxpose.xlu0.b32.cont [6/16] %v227, 128
        %345 = vxpose.xlu0.b32.cont [7/16] %v230, 128
        %346 = vxpose.xlu0.b32.cont [8/16] %v233, 128
        %347 = vxpose.xlu0.b32.cont [9/16] 0.0, 128
        %348 = vxpose.xlu0.b32.cont [10/16] 0.0, 128
        %349 = vxpose.xlu0.b32.cont [11/16] 0.0, 128
        %350 = vxpose.xlu0.b32.cont [12/16] 0.0, 128
        %351 = vxpose.xlu0.b32.cont [13/16] 0.0, 128
        %352 = vxpose.xlu0.b32.cont [14/16] 0.0, 128
        %353 = vxpose.xlu0.b32.cont [15/16] 0.0, 128
        %354 = vxpose.xlu0.b32.end [16/16] 0.0, 128
        %v355 = vpop.trf.xlu0
        %v356 = vpop.trf.xlu0
        %v357 = vpop.trf.xlu0
        %v358 = vpop.trf.xlu0
        %v359 = vpop.trf.xlu0
        %v360 = vpop.trf.xlu0
        %v361 = vpop.trf.xlu0
        %v362 = vpop.trf.xlu0
        %v363 = vpop.trf.xlu0
        %v364 = vpop.trf.xlu0
        %v365 = vpop.trf.xlu0
        %v366 = vpop.trf.xlu0
        %v367 = vpop.trf.xlu0
        %v368 = vpop.trf.xlu0
        %v369 = vpop.trf.xlu0
        %v370 = vpop.trf.xlu0
        %371 = vxpose.xlu0.b32.start [1/16] %v213, 128
        %372 = vxpose.xlu0.b32.cont [2/16] %v216, 128
        %373 = vxpose.xlu0.b32.cont [3/16] %v219, 128
        %374 = vxpose.xlu0.b32.cont [4/16] %v222, 128
        %375 = vxpose.xlu0.b32.cont [5/16] %v225, 128
        %376 = vxpose.xlu0.b32.cont [6/16] %v228, 128
        %377 = vxpose.xlu0.b32.cont [7/16] %v231, 128
        %378 = vxpose.xlu0.b32.cont [8/16] %v234, 128
        %379 = vxpose.xlu0.b32.cont [9/16] 0.0, 128
        %380 = vxpose.xlu0.b32.cont [10/16] 0.0, 128
        %381 = vxpose.xlu0.b32.cont [11/16] 0.0, 128
        %382 = vxpose.xlu0.b32.cont [12/16] 0.0, 128
        %383 = vxpose.xlu0.b32.cont [13/16] 0.0, 128
        %384 = vxpose.xlu0.b32.cont [14/16] 0.0, 128
        %385 = vxpose.xlu0.b32.cont [15/16] 0.0, 128
        %386 = vxpose.xlu0.b32.end [16/16] 0.0, 128
        %v387 = vpop.trf.xlu0
        %v388 = vpop.trf.xlu0
        %v389 = vpop.trf.xlu0
        %v390 = vpop.trf.xlu0
        %v391 = vpop.trf.xlu0
        %v392 = vpop.trf.xlu0
        %v393 = vpop.trf.xlu0
        %v394 = vpop.trf.xlu0
        %v395 = vpop.trf.xlu0
        %v396 = vpop.trf.xlu0
        %v397 = vpop.trf.xlu0
        %v398 = vpop.trf.xlu0
        %v399 = vpop.trf.xlu0
        %v400 = vpop.trf.xlu0
        %v401 = vpop.trf.xlu0
        %v402 = vpop.trf.xlu0
        %vm403 = vcmask 523264
        %v405 = vsel %vm403, %v323, 0
        %v408 = vsel %vm403, %v324, 0
        %v411 = vsel %vm403, %v325, 0
        %v414 = vsel %vm403, %v326, 0
        %v417 = vsel %vm403, %v327, 0
        %v420 = vsel %vm403, %v328, 0
        %v423 = vsel %vm403, %v329, 0
        %v426 = vsel %vm403, %v330, 0
        %v429 = vsel %vm403, %v331, 0
        %v432 = vsel %vm403, %v332, 0
        %v435 = vsel %vm403, %v333, 0
        %v438 = vsel %vm403, %v334, 0
        %v441 = vsel %vm403, %v335, 0
        %v444 = vsel %vm403, %v336, 0
        %v447 = vsel %vm403, %v337, 0
        %v450 = vsel %vm403, %v338, 0
        %v453 = vsel %vm403, %v355, 0
        %v456 = vsel %vm403, %v356, 0
        %v459 = vsel %vm403, %v357, 0
        %v462 = vsel %vm403, %v358, 0
        %v465 = vsel %vm403, %v359, 0
        %v468 = vsel %vm403, %v360, 0
        %v471 = vsel %vm403, %v361, 0
        %v474 = vsel %vm403, %v362, 0
        %v477 = vsel %vm403, %v363, 0
        %v480 = vsel %vm403, %v364, 0
        %v483 = vsel %vm403, %v365, 0
        %v486 = vsel %vm403, %v366, 0
        %v489 = vsel %vm403, %v367, 0
        %v492 = vsel %vm403, %v368, 0
        %v495 = vsel %vm403, %v369, 0
        %v498 = vsel %vm403, %v370, 0
        %v501 = vsel %vm403, %v387, 0
        %v504 = vsel %vm403, %v388, 0
        %v507 = vsel %vm403, %v389, 0
        %v510 = vsel %vm403, %v390, 0
        %v513 = vsel %vm403, %v391, 0
        %v516 = vsel %vm403, %v392, 0
        %v519 = vsel %vm403, %v393, 0
        %v522 = vsel %vm403, %v394, 0
        %v525 = vsel %vm403, %v395, 0
        %v528 = vsel %vm403, %v396, 0
        %v531 = vsel %vm403, %v397, 0
        %v534 = vsel %vm403, %v398, 0
        %v537 = vsel %vm403, %v399, 0
        %v540 = vsel %vm403, %v400, 0
        %v543 = vsel %vm403, %v401, 0
        %v546 = vsel %vm403, %v402, 0
        %548 = vmatpush.msra.mxu0 0.0
        %549 = vmatpush.msra.mxu0 0.0
        %550 = vmatpush.msra.mxu0 0.0
        %551 = vmatpush.msra.mxu0 0.0
        %552 = vmatpush.msra.mxu0 0.0
        %553 = vmatpush.msra.mxu0 0.0
        %554 = vmatpush.msra.mxu0 0.0
        %555 = vmatpush.msra.mxu0 0.0
        %556 = vmatpush.msra.mxu0 %v280
        %557 = vmatpush.msra.mxu0 %v277
        %558 = vmatpush.msra.mxu0 %v274
        %559 = vmatpush.msra.mxu0 %v271
        %560 = vmatpush.msra.mxu0 %v268
        %561 = vmatpush.msra.mxu0 %v265
        %562 = vmatpush.msra.mxu0 %v262
        %563 = vmatpush.msra.mxu0 %v259
        %564 = vmatmul.f32.gmra.mxu0 %v405
        %v565 = vpop.f32.mrf.mxu0
        %v566 = vadd.f32 0.0, %v565
        %567 = vmatmul.f32.gmra.mxu0 %v408
        %v568 = vpop.f32.mrf.mxu0
        %v569 = vadd.f32 0.0, %v568
        %570 = vmatmul.f32.gmra.mxu0 %v411
        %v571 = vpop.f32.mrf.mxu0
        %v572 = vadd.f32 0.0, %v571
        %573 = vmatmul.f32.gmra.mxu0 %v414
        %v574 = vpop.f32.mrf.mxu0
        %v575 = vadd.f32 0.0, %v574
        %576 = vmatmul.f32.gmra.mxu0 %v417
        %v577 = vpop.f32.mrf.mxu0
        %v578 = vadd.f32 0.0, %v577
        %579 = vmatmul.f32.gmra.mxu0 %v420
        %v580 = vpop.f32.mrf.mxu0
        %v581 = vadd.f32 0.0, %v580
        %582 = vmatmul.f32.gmra.mxu0 %v423
        %v583 = vpop.f32.mrf.mxu0
        %v584 = vadd.f32 0.0, %v583
        %585 = vmatmul.f32.gmra.mxu0 %v426
        %v586 = vpop.f32.mrf.mxu0
        %v587 = vadd.f32 0.0, %v586
        %588 = vmatmul.f32.gmra.mxu0 %v429
        %v589 = vpop.f32.mrf.mxu0
        %v590 = vadd.f32 0.0, %v589
        %591 = vmatmul.f32.gmra.mxu0 %v432
        %v592 = vpop.f32.mrf.mxu0
        %v593 = vadd.f32 0.0, %v592
        %594 = vmatmul.f32.gmra.mxu0 %v435
        %v595 = vpop.f32.mrf.mxu0
        %v596 = vadd.f32 0.0, %v595
        %597 = vmatmul.f32.gmra.mxu0 %v438
        %v598 = vpop.f32.mrf.mxu0
        %v599 = vadd.f32 0.0, %v598
        %600 = vmatmul.f32.gmra.mxu0 %v441
        %v601 = vpop.f32.mrf.mxu0
        %v602 = vadd.f32 0.0, %v601
        %603 = vmatmul.f32.gmra.mxu0 %v444
        %v604 = vpop.f32.mrf.mxu0
        %v605 = vadd.f32 0.0, %v604
        %606 = vmatmul.f32.gmra.mxu0 %v447
        %v607 = vpop.f32.mrf.mxu0
        %v608 = vadd.f32 0.0, %v607
        %609 = vmatmul.f32.gmra.mxu0 %v450
        %v610 = vpop.f32.mrf.mxu0
        %v611 = vadd.f32 0.0, %v610
        %612 = vmatmul.f32.gmra.mxu0 %v453
        %v613 = vpop.f32.mrf.mxu0
        %v614 = vadd.f32 0.0, %v613
        %615 = vmatmul.f32.gmra.mxu0 %v456
        %v616 = vpop.f32.mrf.mxu0
        %v617 = vadd.f32 0.0, %v616
        %618 = vmatmul.f32.gmra.mxu0 %v459
        %v619 = vpop.f32.mrf.mxu0
        %v620 = vadd.f32 0.0, %v619
        %621 = vmatmul.f32.gmra.mxu0 %v462
        %v622 = vpop.f32.mrf.mxu0
        %v623 = vadd.f32 0.0, %v622
        %624 = vmatmul.f32.gmra.mxu0 %v465
        %v625 = vpop.f32.mrf.mxu0
        %v626 = vadd.f32 0.0, %v625
        %627 = vmatmul.f32.gmra.mxu0 %v468
        %v628 = vpop.f32.mrf.mxu0
        %v629 = vadd.f32 0.0, %v628
        %630 = vmatmul.f32.gmra.mxu0 %v471
        %v631 = vpop.f32.mrf.mxu0
        %v632 = vadd.f32 0.0, %v631
        %633 = vmatmul.f32.gmra.mxu0 %v474
        %v634 = vpop.f32.mrf.mxu0
        %v635 = vadd.f32 0.0, %v634
        %636 = vmatmul.f32.gmra.mxu0 %v477
        %v637 = vpop.f32.mrf.mxu0
        %v638 = vadd.f32 0.0, %v637
        %639 = vmatmul.f32.gmra.mxu0 %v480
        %v640 = vpop.f32.mrf.mxu0
        %v641 = vadd.f32 0.0, %v640
        %642 = vmatmul.f32.gmra.mxu0 %v483
        %v643 = vpop.f32.mrf.mxu0
        %v644 = vadd.f32 0.0, %v643
        %645 = vmatmul.f32.gmra.mxu0 %v486
        %v646 = vpop.f32.mrf.mxu0
        %v647 = vadd.f32 0.0, %v646
        %648 = vmatmul.f32.gmra.mxu0 %v489
        %v649 = vpop.f32.mrf.mxu0
        %v650 = vadd.f32 0.0, %v649
        %651 = vmatmul.f32.gmra.mxu0 %v492
        %v652 = vpop.f32.mrf.mxu0
        %v653 = vadd.f32 0.0, %v652
        %654 = vmatmul.f32.gmra.mxu0 %v495
        %v655 = vpop.f32.mrf.mxu0
        %v656 = vadd.f32 0.0, %v655
        %657 = vmatmul.f32.gmra.mxu0 %v498
        %v658 = vpop.f32.mrf.mxu0
        %v659 = vadd.f32 0.0, %v658
        %660 = vmatmul.f32.gmra.mxu0 %v501
        %v661 = vpop.f32.mrf.mxu0
        %v662 = vadd.f32 0.0, %v661
        %663 = vmatmul.f32.gmra.mxu0 %v504
        %v664 = vpop.f32.mrf.mxu0
        %v665 = vadd.f32 0.0, %v664
        %666 = vmatmul.f32.gmra.mxu0 %v507
        %v667 = vpop.f32.mrf.mxu0
        %v668 = vadd.f32 0.0, %v667
        %669 = vmatmul.f32.gmra.mxu0 %v510
        %v670 = vpop.f32.mrf.mxu0
        %v671 = vadd.f32 0.0, %v670
        %672 = vmatmul.f32.gmra.mxu0 %v513
        %v673 = vpop.f32.mrf.mxu0
        %v674 = vadd.f32 0.0, %v673
        %675 = vmatmul.f32.gmra.mxu0 %v516
        %v676 = vpop.f32.mrf.mxu0
        %v677 = vadd.f32 0.0, %v676
        %678 = vmatmul.f32.gmra.mxu0 %v519
        %v679 = vpop.f32.mrf.mxu0
        %v680 = vadd.f32 0.0, %v679
        %681 = vmatmul.f32.gmra.mxu0 %v522
        %v682 = vpop.f32.mrf.mxu0
        %v683 = vadd.f32 0.0, %v682
        %684 = vmatmul.f32.gmra.mxu0 %v525
        %v685 = vpop.f32.mrf.mxu0
        %v686 = vadd.f32 0.0, %v685
        %687 = vmatmul.f32.gmra.mxu0 %v528
        %v688 = vpop.f32.mrf.mxu0
        %v689 = vadd.f32 0.0, %v688
        %690 = vmatmul.f32.gmra.mxu0 %v531
        %v691 = vpop.f32.mrf.mxu0
        %v692 = vadd.f32 0.0, %v691
        %693 = vmatmul.f32.gmra.mxu0 %v534
        %v694 = vpop.f32.mrf.mxu0
        %v695 = vadd.f32 0.0, %v694
        %696 = vmatmul.f32.gmra.mxu0 %v537
        %v697 = vpop.f32.mrf.mxu0
        %v698 = vadd.f32 0.0, %v697
        %699 = vmatmul.f32.gmra.mxu0 %v540
        %v700 = vpop.f32.mrf.mxu0
        %v701 = vadd.f32 0.0, %v700
        %702 = vmatmul.f32.gmra.mxu0 %v543
        %v703 = vpop.f32.mrf.mxu0
        %v704 = vadd.f32 0.0, %v703
        %705 = vmatmul.f32.gmra.mxu0 %v546
        %v706 = vpop.f32.mrf.mxu0
        %v707 = vadd.f32 0.0, %v706
        %708 = vdwg.mxu0
        %709 = vmatpush.msra.mxu0 0.0
        %710 = vmatpush.msra.mxu0 0.0
        %711 = vmatpush.msra.mxu0 0.0
        %712 = vmatpush.msra.mxu0 0.0
        %713 = vmatpush.msra.mxu0 0.0
        %714 = vmatpush.msra.mxu0 0.0
        %715 = vmatpush.msra.mxu0 0.0
        %716 = vmatpush.msra.mxu0 0.0
        %717 = vmatpush.msra.mxu0 %v281
        %718 = vmatpush.msra.mxu0 %v278
        %719 = vmatpush.msra.mxu0 %v275
        %720 = vmatpush.msra.mxu0 %v272
        %721 = vmatpush.msra.mxu0 %v269
        %722 = vmatpush.msra.mxu0 %v266
        %723 = vmatpush.msra.mxu0 %v263
        %724 = vmatpush.msra.mxu0 %v260
        %725 = vmatmul.f32.gmra.mxu0 %v405
        %v726 = vpop.f32.mrf.mxu0
        %v727 = vadd.f32 0.0, %v726
        %728 = vmatmul.f32.gmra.mxu0 %v408
        %v729 = vpop.f32.mrf.mxu0
        %v730 = vadd.f32 0.0, %v729
        %731 = vmatmul.f32.gmra.mxu0 %v411
        %v732 = vpop.f32.mrf.mxu0
        %v733 = vadd.f32 0.0, %v732
        %734 = vmatmul.f32.gmra.mxu0 %v414
        %v735 = vpop.f32.mrf.mxu0
        %v736 = vadd.f32 0.0, %v735
        %737 = vmatmul.f32.gmra.mxu0 %v417
        %v738 = vpop.f32.mrf.mxu0
        %v739 = vadd.f32 0.0, %v738
        %740 = vmatmul.f32.gmra.mxu0 %v420
        %v741 = vpop.f32.mrf.mxu0
        %v742 = vadd.f32 0.0, %v741
        %743 = vmatmul.f32.gmra.mxu0 %v423
        %v744 = vpop.f32.mrf.mxu0
        %v745 = vadd.f32 0.0, %v744
        %746 = vmatmul.f32.gmra.mxu0 %v426
        %v747 = vpop.f32.mrf.mxu0
        %v748 = vadd.f32 0.0, %v747
        %749 = vmatmul.f32.gmra.mxu0 %v429
        %v750 = vpop.f32.mrf.mxu0
        %v751 = vadd.f32 0.0, %v750
        %752 = vmatmul.f32.gmra.mxu0 %v432
        %v753 = vpop.f32.mrf.mxu0
        %v754 = vadd.f32 0.0, %v753
        %755 = vmatmul.f32.gmra.mxu0 %v435
        %v756 = vpop.f32.mrf.mxu0
        %v757 = vadd.f32 0.0, %v756
        %758 = vmatmul.f32.gmra.mxu0 %v438
        %v759 = vpop.f32.mrf.mxu0
        %v760 = vadd.f32 0.0, %v759
        %761 = vmatmul.f32.gmra.mxu0 %v441
        %v762 = vpop.f32.mrf.mxu0
        %v763 = vadd.f32 0.0, %v762
        %764 = vmatmul.f32.gmra.mxu0 %v444
        %v765 = vpop.f32.mrf.mxu0
        %v766 = vadd.f32 0.0, %v765
        %767 = vmatmul.f32.gmra.mxu0 %v447
        %v768 = vpop.f32.mrf.mxu0
        %v769 = vadd.f32 0.0, %v768
        %770 = vmatmul.f32.gmra.mxu0 %v450
        %v771 = vpop.f32.mrf.mxu0
        %v772 = vadd.f32 0.0, %v771
        %773 = vmatmul.f32.gmra.mxu0 %v453
        %v774 = vpop.f32.mrf.mxu0
        %v775 = vadd.f32 0.0, %v774
        %776 = vmatmul.f32.gmra.mxu0 %v456
        %v777 = vpop.f32.mrf.mxu0
        %v778 = vadd.f32 0.0, %v777
        %779 = vmatmul.f32.gmra.mxu0 %v459
        %v780 = vpop.f32.mrf.mxu0
        %v781 = vadd.f32 0.0, %v780
        %782 = vmatmul.f32.gmra.mxu0 %v462
        %v783 = vpop.f32.mrf.mxu0
        %v784 = vadd.f32 0.0, %v783
        %785 = vmatmul.f32.gmra.mxu0 %v465
        %v786 = vpop.f32.mrf.mxu0
        %v787 = vadd.f32 0.0, %v786
        %788 = vmatmul.f32.gmra.mxu0 %v468
        %v789 = vpop.f32.mrf.mxu0
        %v790 = vadd.f32 0.0, %v789
        %791 = vmatmul.f32.gmra.mxu0 %v471
        %v792 = vpop.f32.mrf.mxu0
        %v793 = vadd.f32 0.0, %v792
        %794 = vmatmul.f32.gmra.mxu0 %v474
        %v795 = vpop.f32.mrf.mxu0
        %v796 = vadd.f32 0.0, %v795
        %797 = vmatmul.f32.gmra.mxu0 %v477
        %v798 = vpop.f32.mrf.mxu0
        %v799 = vadd.f32 0.0, %v798
        %800 = vmatmul.f32.gmra.mxu0 %v480
        %v801 = vpop.f32.mrf.mxu0
        %v802 = vadd.f32 0.0, %v801
        %803 = vmatmul.f32.gmra.mxu0 %v483
        %v804 = vpop.f32.mrf.mxu0
        %v805 = vadd.f32 0.0, %v804
        %806 = vmatmul.f32.gmra.mxu0 %v486
        %v807 = vpop.f32.mrf.mxu0
        %v808 = vadd.f32 0.0, %v807
        %809 = vmatmul.f32.gmra.mxu0 %v489
        %v810 = vpop.f32.mrf.mxu0
        %v811 = vadd.f32 0.0, %v810
        %812 = vmatmul.f32.gmra.mxu0 %v492
        %v813 = vpop.f32.mrf.mxu0
        %v814 = vadd.f32 0.0, %v813
        %815 = vmatmul.f32.gmra.mxu0 %v495
        %v816 = vpop.f32.mrf.mxu0
        %v817 = vadd.f32 0.0, %v816
        %818 = vmatmul.f32.gmra.mxu0 %v498
        %v819 = vpop.f32.mrf.mxu0
        %v820 = vadd.f32 0.0, %v819
        %821 = vmatmul.f32.gmra.mxu0 %v501
        %v822 = vpop.f32.mrf.mxu0
        %v823 = vadd.f32 0.0, %v822
        %824 = vmatmul.f32.gmra.mxu0 %v504
        %v825 = vpop.f32.mrf.mxu0
        %v826 = vadd.f32 0.0, %v825
        %827 = vmatmul.f32.gmra.mxu0 %v507
        %v828 = vpop.f32.mrf.mxu0
        %v829 = vadd.f32 0.0, %v828
        %830 = vmatmul.f32.gmra.mxu0 %v510
        %v831 = vpop.f32.mrf.mxu0
        %v832 = vadd.f32 0.0, %v831
        %833 = vmatmul.f32.gmra.mxu0 %v513
        %v834 = vpop.f32.mrf.mxu0
        %v835 = vadd.f32 0.0, %v834
        %836 = vmatmul.f32.gmra.mxu0 %v516
        %v837 = vpop.f32.mrf.mxu0
        %v838 = vadd.f32 0.0, %v837
        %839 = vmatmul.f32.gmra.mxu0 %v519
        %v840 = vpop.f32.mrf.mxu0
        %v841 = vadd.f32 0.0, %v840
        %842 = vmatmul.f32.gmra.mxu0 %v522
        %v843 = vpop.f32.mrf.mxu0
        %v844 = vadd.f32 0.0, %v843
        %845 = vmatmul.f32.gmra.mxu0 %v525
        %v846 = vpop.f32.mrf.mxu0
        %v847 = vadd.f32 0.0, %v846
        %848 = vmatmul.f32.gmra.mxu0 %v528
        %v849 = vpop.f32.mrf.mxu0
        %v850 = vadd.f32 0.0, %v849
        %851 = vmatmul.f32.gmra.mxu0 %v531
        %v852 = vpop.f32.mrf.mxu0
        %v853 = vadd.f32 0.0, %v852
        %854 = vmatmul.f32.gmra.mxu0 %v534
        %v855 = vpop.f32.mrf.mxu0
        %v856 = vadd.f32 0.0, %v855
        %857 = vmatmul.f32.gmra.mxu0 %v537
        %v858 = vpop.f32.mrf.mxu0
        %v859 = vadd.f32 0.0, %v858
        %860 = vmatmul.f32.gmra.mxu0 %v540
        %v861 = vpop.f32.mrf.mxu0
        %v862 = vadd.f32 0.0, %v861
        %863 = vmatmul.f32.gmra.mxu0 %v543
        %v864 = vpop.f32.mrf.mxu0
        %v865 = vadd.f32 0.0, %v864
        %866 = vmatmul.f32.gmra.mxu0 %v546
        %v867 = vpop.f32.mrf.mxu0
        %v868 = vadd.f32 0.0, %v867
        %869 = vdwg.mxu0
        %870 = vmatpush.msra.mxu0 0.0
        %871 = vmatpush.msra.mxu0 0.0
        %872 = vmatpush.msra.mxu0 0.0
        %873 = vmatpush.msra.mxu0 0.0
        %874 = vmatpush.msra.mxu0 0.0
        %875 = vmatpush.msra.mxu0 0.0
        %876 = vmatpush.msra.mxu0 0.0
        %877 = vmatpush.msra.mxu0 0.0
        %878 = vmatpush.msra.mxu0 %v282
        %879 = vmatpush.msra.mxu0 %v279
        %880 = vmatpush.msra.mxu0 %v276
        %881 = vmatpush.msra.mxu0 %v273
        %882 = vmatpush.msra.mxu0 %v270
        %883 = vmatpush.msra.mxu0 %v267
        %884 = vmatpush.msra.mxu0 %v264
        %885 = vmatpush.msra.mxu0 %v261
        %886 = vmatmul.f32.gmra.mxu0 %v405
        %v887 = vpop.f32.mrf.mxu0
        %v888 = vadd.f32 0.0, %v887
        %889 = vmatmul.f32.gmra.mxu0 %v408
        %v890 = vpop.f32.mrf.mxu0
        %v891 = vadd.f32 0.0, %v890
        %892 = vmatmul.f32.gmra.mxu0 %v411
        %v893 = vpop.f32.mrf.mxu0
        %v894 = vadd.f32 0.0, %v893
        %895 = vmatmul.f32.gmra.mxu0 %v414
        %v896 = vpop.f32.mrf.mxu0
        %v897 = vadd.f32 0.0, %v896
        %898 = vmatmul.f32.gmra.mxu0 %v417
        %v899 = vpop.f32.mrf.mxu0
        %v900 = vadd.f32 0.0, %v899
        %901 = vmatmul.f32.gmra.mxu0 %v420
        %v902 = vpop.f32.mrf.mxu0
        %v903 = vadd.f32 0.0, %v902
        %904 = vmatmul.f32.gmra.mxu0 %v423
        %v905 = vpop.f32.mrf.mxu0
        %v906 = vadd.f32 0.0, %v905
        %907 = vmatmul.f32.gmra.mxu0 %v426
        %v908 = vpop.f32.mrf.mxu0
        %v909 = vadd.f32 0.0, %v908
        %910 = vmatmul.f32.gmra.mxu0 %v429
        %v911 = vpop.f32.mrf.mxu0
        %v912 = vadd.f32 0.0, %v911
        %913 = vmatmul.f32.gmra.mxu0 %v432
        %v914 = vpop.f32.mrf.mxu0
        %v915 = vadd.f32 0.0, %v914
        %916 = vmatmul.f32.gmra.mxu0 %v435
        %v917 = vpop.f32.mrf.mxu0
        %v918 = vadd.f32 0.0, %v917
        %919 = vmatmul.f32.gmra.mxu0 %v438
        %v920 = vpop.f32.mrf.mxu0
        %v921 = vadd.f32 0.0, %v920
        %922 = vmatmul.f32.gmra.mxu0 %v441
        %v923 = vpop.f32.mrf.mxu0
        %v924 = vadd.f32 0.0, %v923
        %925 = vmatmul.f32.gmra.mxu0 %v444
        %v926 = vpop.f32.mrf.mxu0
        %v927 = vadd.f32 0.0, %v926
        %928 = vmatmul.f32.gmra.mxu0 %v447
        %v929 = vpop.f32.mrf.mxu0
        %v930 = vadd.f32 0.0, %v929
        %931 = vmatmul.f32.gmra.mxu0 %v450
        %v932 = vpop.f32.mrf.mxu0
        %v933 = vadd.f32 0.0, %v932
        %934 = vmatmul.f32.gmra.mxu0 %v453
        %v935 = vpop.f32.mrf.mxu0
        %v936 = vadd.f32 0.0, %v935
        %937 = vmatmul.f32.gmra.mxu0 %v456
        %v938 = vpop.f32.mrf.mxu0
        %v939 = vadd.f32 0.0, %v938
        %940 = vmatmul.f32.gmra.mxu0 %v459
        %v941 = vpop.f32.mrf.mxu0
        %v942 = vadd.f32 0.0, %v941
        %943 = vmatmul.f32.gmra.mxu0 %v462
        %v944 = vpop.f32.mrf.mxu0
        %v945 = vadd.f32 0.0, %v944
        %946 = vmatmul.f32.gmra.mxu0 %v465
        %v947 = vpop.f32.mrf.mxu0
        %v948 = vadd.f32 0.0, %v947
        %949 = vmatmul.f32.gmra.mxu0 %v468
        %v950 = vpop.f32.mrf.mxu0
        %v951 = vadd.f32 0.0, %v950
        %952 = vmatmul.f32.gmra.mxu0 %v471
        %v953 = vpop.f32.mrf.mxu0
        %v954 = vadd.f32 0.0, %v953
        %955 = vmatmul.f32.gmra.mxu0 %v474
        %v956 = vpop.f32.mrf.mxu0
        %v957 = vadd.f32 0.0, %v956
        %958 = vmatmul.f32.gmra.mxu0 %v477
        %v959 = vpop.f32.mrf.mxu0
        %v960 = vadd.f32 0.0, %v959
        %961 = vmatmul.f32.gmra.mxu0 %v480
        %v962 = vpop.f32.mrf.mxu0
        %v963 = vadd.f32 0.0, %v962
        %964 = vmatmul.f32.gmra.mxu0 %v483
        %v965 = vpop.f32.mrf.mxu0
        %v966 = vadd.f32 0.0, %v965
        %967 = vmatmul.f32.gmra.mxu0 %v486
        %v968 = vpop.f32.mrf.mxu0
        %v969 = vadd.f32 0.0, %v968
        %970 = vmatmul.f32.gmra.mxu0 %v489
        %v971 = vpop.f32.mrf.mxu0
        %v972 = vadd.f32 0.0, %v971
        %973 = vmatmul.f32.gmra.mxu0 %v492
        %v974 = vpop.f32.mrf.mxu0
        %v975 = vadd.f32 0.0, %v974
        %976 = vmatmul.f32.gmra.mxu0 %v495
        %v977 = vpop.f32.mrf.mxu0
        %v978 = vadd.f32 0.0, %v977
        %979 = vmatmul.f32.gmra.mxu0 %v498
        %v980 = vpop.f32.mrf.mxu0
        %v981 = vadd.f32 0.0, %v980
        %982 = vmatmul.f32.gmra.mxu0 %v501
        %v983 = vpop.f32.mrf.mxu0
        %v984 = vadd.f32 0.0, %v983
        %985 = vmatmul.f32.gmra.mxu0 %v504
        %v986 = vpop.f32.mrf.mxu0
        %v987 = vadd.f32 0.0, %v986
        %988 = vmatmul.f32.gmra.mxu0 %v507
        %v989 = vpop.f32.mrf.mxu0
        %v990 = vadd.f32 0.0, %v989
        %991 = vmatmul.f32.gmra.mxu0 %v510
        %v992 = vpop.f32.mrf.mxu0
        %v993 = vadd.f32 0.0, %v992
        %994 = vmatmul.f32.gmra.mxu0 %v513
        %v995 = vpop.f32.mrf.mxu0
        %v996 = vadd.f32 0.0, %v995
        %997 = vmatmul.f32.gmra.mxu0 %v516
        %v998 = vpop.f32.mrf.mxu0
        %v999 = vadd.f32 0.0, %v998
        %1000 = vmatmul.f32.gmra.mxu0 %v519
        %v1001 = vpop.f32.mrf.mxu0
        %v1002 = vadd.f32 0.0, %v1001
        %1003 = vmatmul.f32.gmra.mxu0 %v522
        %v1004 = vpop.f32.mrf.mxu0
        %v1005 = vadd.f32 0.0, %v1004
        %1006 = vmatmul.f32.gmra.mxu0 %v525
        %v1007 = vpop.f32.mrf.mxu0
        %v1008 = vadd.f32 0.0, %v1007
        %1009 = vmatmul.f32.gmra.mxu0 %v528
        %v1010 = vpop.f32.mrf.mxu0
        %v1011 = vadd.f32 0.0, %v1010
        %1012 = vmatmul.f32.gmra.mxu0 %v531
        %v1013 = vpop.f32.mrf.mxu0
        %v1014 = vadd.f32 0.0, %v1013
        %1015 = vmatmul.f32.gmra.mxu0 %v534
        %v1016 = vpop.f32.mrf.mxu0
        %v1017 = vadd.f32 0.0, %v1016
        %1018 = vmatmul.f32.gmra.mxu0 %v537
        %v1019 = vpop.f32.mrf.mxu0
        %v1020 = vadd.f32 0.0, %v1019
        %1021 = vmatmul.f32.gmra.mxu0 %v540
        %v1022 = vpop.f32.mrf.mxu0
        %v1023 = vadd.f32 0.0, %v1022
        %1024 = vmatmul.f32.gmra.mxu0 %v543
        %v1025 = vpop.f32.mrf.mxu0
        %v1026 = vadd.f32 0.0, %v1025
        %1027 = vmatmul.f32.gmra.mxu0 %v546
        %v1028 = vpop.f32.mrf.mxu0
        %v1029 = vadd.f32 0.0, %v1028
        %1030 = vdwg.mxu0
        %1031 = vxpose.xlu0.b32.start [1/16] %v235, 128
        %1032 = vxpose.xlu0.b32.cont [2/16] %v238, 128
        %1033 = vxpose.xlu0.b32.cont [3/16] %v241, 128
        %1034 = vxpose.xlu0.b32.cont [4/16] %v244, 128
        %1035 = vxpose.xlu0.b32.cont [5/16] %v247, 128
        %1036 = vxpose.xlu0.b32.cont [6/16] %v250, 128
        %1037 = vxpose.xlu0.b32.cont [7/16] %v253, 128
        %1038 = vxpose.xlu0.b32.cont [8/16] %v256, 128
        %1039 = vxpose.xlu0.b32.cont [9/16] 0.0, 128
        %1040 = vxpose.xlu0.b32.cont [10/16] 0.0, 128
        %1041 = vxpose.xlu0.b32.cont [11/16] 0.0, 128
        %1042 = vxpose.xlu0.b32.cont [12/16] 0.0, 128
        %1043 = vxpose.xlu0.b32.cont [13/16] 0.0, 128
        %1044 = vxpose.xlu0.b32.cont [14/16] 0.0, 128
        %1045 = vxpose.xlu0.b32.cont [15/16] 0.0, 128
        %1046 = vxpose.xlu0.b32.end [16/16] 0.0, 128
        %v1047 = vpop.trf.xlu0
        %v1048 = vpop.trf.xlu0
        %v1049 = vpop.trf.xlu0
        %v1050 = vpop.trf.xlu0
        %v1051 = vpop.trf.xlu0
        %v1052 = vpop.trf.xlu0
        %v1053 = vpop.trf.xlu0
        %v1054 = vpop.trf.xlu0
        %v1055 = vpop.trf.xlu0
        %v1056 = vpop.trf.xlu0
        %v1057 = vpop.trf.xlu0
        %v1058 = vpop.trf.xlu0
        %v1059 = vpop.trf.xlu0
        %v1060 = vpop.trf.xlu0
        %v1061 = vpop.trf.xlu0
        %v1062 = vpop.trf.xlu0
        %1063 = vxpose.xlu0.b32.start [1/16] %v236, 128
        %1064 = vxpose.xlu0.b32.cont [2/16] %v239, 128
        %1065 = vxpose.xlu0.b32.cont [3/16] %v242, 128
        %1066 = vxpose.xlu0.b32.cont [4/16] %v245, 128
        %1067 = vxpose.xlu0.b32.cont [5/16] %v248, 128
        %1068 = vxpose.xlu0.b32.cont [6/16] %v251, 128
        %1069 = vxpose.xlu0.b32.cont [7/16] %v254, 128
        %1070 = vxpose.xlu0.b32.cont [8/16] %v257, 128
        %1071 = vxpose.xlu0.b32.cont [9/16] 0.0, 128
        %1072 = vxpose.xlu0.b32.cont [10/16] 0.0, 128
        %1073 = vxpose.xlu0.b32.cont [11/16] 0.0, 128
        %1074 = vxpose.xlu0.b32.cont [12/16] 0.0, 128
        %1075 = vxpose.xlu0.b32.cont [13/16] 0.0, 128
        %1076 = vxpose.xlu0.b32.cont [14/16] 0.0, 128
        %1077 = vxpose.xlu0.b32.cont [15/16] 0.0, 128
        %1078 = vxpose.xlu0.b32.end [16/16] 0.0, 128
        %v1079 = vpop.trf.xlu0
        %v1080 = vpop.trf.xlu0
        %v1081 = vpop.trf.xlu0
        %v1082 = vpop.trf.xlu0
        %v1083 = vpop.trf.xlu0
        %v1084 = vpop.trf.xlu0
        %v1085 = vpop.trf.xlu0
        %v1086 = vpop.trf.xlu0
        %v1087 = vpop.trf.xlu0
        %v1088 = vpop.trf.xlu0
        %v1089 = vpop.trf.xlu0
        %v1090 = vpop.trf.xlu0
        %v1091 = vpop.trf.xlu0
        %v1092 = vpop.trf.xlu0
        %v1093 = vpop.trf.xlu0
        %v1094 = vpop.trf.xlu0
        %1095 = vxpose.xlu0.b32.start [1/16] %v237, 128
        %1096 = vxpose.xlu0.b32.cont [2/16] %v240, 128
        %1097 = vxpose.xlu0.b32.cont [3/16] %v243, 128
        %1098 = vxpose.xlu0.b32.cont [4/16] %v246, 128
        %1099 = vxpose.xlu0.b32.cont [5/16] %v249, 128
        %1100 = vxpose.xlu0.b32.cont [6/16] %v252, 128
        %1101 = vxpose.xlu0.b32.cont [7/16] %v255, 128
        %1102 = vxpose.xlu0.b32.cont [8/16] %v258, 128
        %1103 = vxpose.xlu0.b32.cont [9/16] 0.0, 128
        %1104 = vxpose.xlu0.b32.cont [10/16] 0.0, 128
        %1105 = vxpose.xlu0.b32.cont [11/16] 0.0, 128
        %1106 = vxpose.xlu0.b32.cont [12/16] 0.0, 128
        %1107 = vxpose.xlu0.b32.cont [13/16] 0.0, 128
        %1108 = vxpose.xlu0.b32.cont [14/16] 0.0, 128
        %1109 = vxpose.xlu0.b32.cont [15/16] 0.0, 128
        %1110 = vxpose.xlu0.b32.end [16/16] 0.0, 128
        %v1111 = vpop.trf.xlu0
        %v1112 = vpop.trf.xlu0
        %v1113 = vpop.trf.xlu0
        %v1114 = vpop.trf.xlu0
        %v1115 = vpop.trf.xlu0
        %v1116 = vpop.trf.xlu0
        %v1117 = vpop.trf.xlu0
        %v1118 = vpop.trf.xlu0
        %v1119 = vpop.trf.xlu0
        %v1120 = vpop.trf.xlu0
        %v1121 = vpop.trf.xlu0
        %v1122 = vpop.trf.xlu0
        %v1123 = vpop.trf.xlu0
        %v1124 = vpop.trf.xlu0
        %v1125 = vpop.trf.xlu0
        %v1126 = vpop.trf.xlu0
        %v1128 = vsel %vm403, %v1047, 0
        %v1131 = vsel %vm403, %v1048, 0
        %v1134 = vsel %vm403, %v1049, 0
        %v1137 = vsel %vm403, %v1050, 0
        %v1140 = vsel %vm403, %v1051, 0
        %v1143 = vsel %vm403, %v1052, 0
        %v1146 = vsel %vm403, %v1053, 0
        %v1149 = vsel %vm403, %v1054, 0
        %v1152 = vsel %vm403, %v1055, 0
        %v1155 = vsel %vm403, %v1056, 0
        %v1158 = vsel %vm403, %v1057, 0
        %v1161 = vsel %vm403, %v1058, 0
        %v1164 = vsel %vm403, %v1059, 0
        %v1167 = vsel %vm403, %v1060, 0
        %v1170 = vsel %vm403, %v1061, 0
        %v1173 = vsel %vm403, %v1062, 0
        %v1176 = vsel %vm403, %v1079, 0
        %v1179 = vsel %vm403, %v1080, 0
        %v1182 = vsel %vm403, %v1081, 0
        %v1185 = vsel %vm403, %v1082, 0
        %v1188 = vsel %vm403, %v1083, 0
        %v1191 = vsel %vm403, %v1084, 0
        %v1194 = vsel %vm403, %v1085, 0
        %v1197 = vsel %vm403, %v1086, 0
        %v1200 = vsel %vm403, %v1087, 0
        %v1203 = vsel %vm403, %v1088, 0
        %v1206 = vsel %vm403, %v1089, 0
        %v1209 = vsel %vm403, %v1090, 0
        %v1212 = vsel %vm403, %v1091, 0
        %v1215 = vsel %vm403, %v1092, 0
        %v1218 = vsel %vm403, %v1093, 0
        %v1221 = vsel %vm403, %v1094, 0
        %v1224 = vsel %vm403, %v1111, 0
        %v1227 = vsel %vm403, %v1112, 0
        %v1230 = vsel %vm403, %v1113, 0
        %v1233 = vsel %vm403, %v1114, 0
        %v1236 = vsel %vm403, %v1115, 0
        %v1239 = vsel %vm403, %v1116, 0
        %v1242 = vsel %vm403, %v1117, 0
        %v1245 = vsel %vm403, %v1118, 0
        %v1248 = vsel %vm403, %v1119, 0
        %v1251 = vsel %vm403, %v1120, 0
        %v1254 = vsel %vm403, %v1121, 0
        %v1257 = vsel %vm403, %v1122, 0
        %v1260 = vsel %vm403, %v1123, 0
        %v1263 = vsel %vm403, %v1124, 0
        %v1266 = vsel %vm403, %v1125, 0
        %v1269 = vsel %vm403, %v1126, 0
        %1271 = vmatpush.msra.mxu0 0.0
        %1272 = vmatpush.msra.mxu0 0.0
        %1273 = vmatpush.msra.mxu0 0.0
        %1274 = vmatpush.msra.mxu0 0.0
        %1275 = vmatpush.msra.mxu0 0.0
        %1276 = vmatpush.msra.mxu0 0.0
        %1277 = vmatpush.msra.mxu0 0.0
        %1278 = vmatpush.msra.mxu0 0.0
        %1279 = vmatpush.msra.mxu0 %v304
        %1280 = vmatpush.msra.mxu0 %v301
        %1281 = vmatpush.msra.mxu0 %v298
        %1282 = vmatpush.msra.mxu0 %v295
        %1283 = vmatpush.msra.mxu0 %v292
        %1284 = vmatpush.msra.mxu0 %v289
        %1285 = vmatpush.msra.mxu0 %v286
        %1286 = vmatpush.msra.mxu0 %v283
        %1287 = vmatmul.f32.gmra.mxu0 %v1128
        %v1288 = vpop.f32.mrf.mxu0
        %v1289 = vadd.f32 0.0, %v1288
        %1290 = vmatmul.f32.gmra.mxu0 %v1131
        %v1291 = vpop.f32.mrf.mxu0
        %v1292 = vadd.f32 0.0, %v1291
        %1293 = vmatmul.f32.gmra.mxu0 %v1134
        %v1294 = vpop.f32.mrf.mxu0
        %v1295 = vadd.f32 0.0, %v1294
        %1296 = vmatmul.f32.gmra.mxu0 %v1137
        %v1297 = vpop.f32.mrf.mxu0
        %v1298 = vadd.f32 0.0, %v1297
        %1299 = vmatmul.f32.gmra.mxu0 %v1140
        %v1300 = vpop.f32.mrf.mxu0
        %v1301 = vadd.f32 0.0, %v1300
        %1302 = vmatmul.f32.gmra.mxu0 %v1143
        %v1303 = vpop.f32.mrf.mxu0
        %v1304 = vadd.f32 0.0, %v1303
        %1305 = vmatmul.f32.gmra.mxu0 %v1146
        %v1306 = vpop.f32.mrf.mxu0
        %v1307 = vadd.f32 0.0, %v1306
        %1308 = vmatmul.f32.gmra.mxu0 %v1149
        %v1309 = vpop.f32.mrf.mxu0
        %v1310 = vadd.f32 0.0, %v1309
        %1311 = vmatmul.f32.gmra.mxu0 %v1152
        %v1312 = vpop.f32.mrf.mxu0
        %v1313 = vadd.f32 0.0, %v1312
        %1314 = vmatmul.f32.gmra.mxu0 %v1155
        %v1315 = vpop.f32.mrf.mxu0
        %v1316 = vadd.f32 0.0, %v1315
        %1317 = vmatmul.f32.gmra.mxu0 %v1158
        %v1318 = vpop.f32.mrf.mxu0
        %v1319 = vadd.f32 0.0, %v1318
        %1320 = vmatmul.f32.gmra.mxu0 %v1161
        %v1321 = vpop.f32.mrf.mxu0
        %v1322 = vadd.f32 0.0, %v1321
        %1323 = vmatmul.f32.gmra.mxu0 %v1164
        %v1324 = vpop.f32.mrf.mxu0
        %v1325 = vadd.f32 0.0, %v1324
        %1326 = vmatmul.f32.gmra.mxu0 %v1167
        %v1327 = vpop.f32.mrf.mxu0
        %v1328 = vadd.f32 0.0, %v1327
        %1329 = vmatmul.f32.gmra.mxu0 %v1170
        %v1330 = vpop.f32.mrf.mxu0
        %v1331 = vadd.f32 0.0, %v1330
        %1332 = vmatmul.f32.gmra.mxu0 %v1173
        %v1333 = vpop.f32.mrf.mxu0
        %v1334 = vadd.f32 0.0, %v1333
        %1335 = vmatmul.f32.gmra.mxu0 %v1176
        %v1336 = vpop.f32.mrf.mxu0
        %v1337 = vadd.f32 0.0, %v1336
        %1338 = vmatmul.f32.gmra.mxu0 %v1179
        %v1339 = vpop.f32.mrf.mxu0
        %v1340 = vadd.f32 0.0, %v1339
        %1341 = vmatmul.f32.gmra.mxu0 %v1182
        %v1342 = vpop.f32.mrf.mxu0
        %v1343 = vadd.f32 0.0, %v1342
        %1344 = vmatmul.f32.gmra.mxu0 %v1185
        %v1345 = vpop.f32.mrf.mxu0
        %v1346 = vadd.f32 0.0, %v1345
        %1347 = vmatmul.f32.gmra.mxu0 %v1188
        %v1348 = vpop.f32.mrf.mxu0
        %v1349 = vadd.f32 0.0, %v1348
        %1350 = vmatmul.f32.gmra.mxu0 %v1191
        %v1351 = vpop.f32.mrf.mxu0
        %v1352 = vadd.f32 0.0, %v1351
        %1353 = vmatmul.f32.gmra.mxu0 %v1194
        %v1354 = vpop.f32.mrf.mxu0
        %v1355 = vadd.f32 0.0, %v1354
        %1356 = vmatmul.f32.gmra.mxu0 %v1197
        %v1357 = vpop.f32.mrf.mxu0
        %v1358 = vadd.f32 0.0, %v1357
        %1359 = vmatmul.f32.gmra.mxu0 %v1200
        %v1360 = vpop.f32.mrf.mxu0
        %v1361 = vadd.f32 0.0, %v1360
        %1362 = vmatmul.f32.gmra.mxu0 %v1203
        %v1363 = vpop.f32.mrf.mxu0
        %v1364 = vadd.f32 0.0, %v1363
        %1365 = vmatmul.f32.gmra.mxu0 %v1206
        %v1366 = vpop.f32.mrf.mxu0
        %v1367 = vadd.f32 0.0, %v1366
        %1368 = vmatmul.f32.gmra.mxu0 %v1209
        %v1369 = vpop.f32.mrf.mxu0
        %v1370 = vadd.f32 0.0, %v1369
        %1371 = vmatmul.f32.gmra.mxu0 %v1212
        %v1372 = vpop.f32.mrf.mxu0
        %v1373 = vadd.f32 0.0, %v1372
        %1374 = vmatmul.f32.gmra.mxu0 %v1215
        %v1375 = vpop.f32.mrf.mxu0
        %v1376 = vadd.f32 0.0, %v1375
        %1377 = vmatmul.f32.gmra.mxu0 %v1218
        %v1378 = vpop.f32.mrf.mxu0
        %v1379 = vadd.f32 0.0, %v1378
        %1380 = vmatmul.f32.gmra.mxu0 %v1221
        %v1381 = vpop.f32.mrf.mxu0
        %v1382 = vadd.f32 0.0, %v1381
        %1383 = vmatmul.f32.gmra.mxu0 %v1224
        %v1384 = vpop.f32.mrf.mxu0
        %v1385 = vadd.f32 0.0, %v1384
        %1386 = vmatmul.f32.gmra.mxu0 %v1227
        %v1387 = vpop.f32.mrf.mxu0
        %v1388 = vadd.f32 0.0, %v1387
        %1389 = vmatmul.f32.gmra.mxu0 %v1230
        %v1390 = vpop.f32.mrf.mxu0
        %v1391 = vadd.f32 0.0, %v1390
        %1392 = vmatmul.f32.gmra.mxu0 %v1233
        %v1393 = vpop.f32.mrf.mxu0
        %v1394 = vadd.f32 0.0, %v1393
        %1395 = vmatmul.f32.gmra.mxu0 %v1236
        %v1396 = vpop.f32.mrf.mxu0
        %v1397 = vadd.f32 0.0, %v1396
        %1398 = vmatmul.f32.gmra.mxu0 %v1239
        %v1399 = vpop.f32.mrf.mxu0
        %v1400 = vadd.f32 0.0, %v1399
        %1401 = vmatmul.f32.gmra.mxu0 %v1242
        %v1402 = vpop.f32.mrf.mxu0
        %v1403 = vadd.f32 0.0, %v1402
        %1404 = vmatmul.f32.gmra.mxu0 %v1245
        %v1405 = vpop.f32.mrf.mxu0
        %v1406 = vadd.f32 0.0, %v1405
        %1407 = vmatmul.f32.gmra.mxu0 %v1248
        %v1408 = vpop.f32.mrf.mxu0
        %v1409 = vadd.f32 0.0, %v1408
        %1410 = vmatmul.f32.gmra.mxu0 %v1251
        %v1411 = vpop.f32.mrf.mxu0
        %v1412 = vadd.f32 0.0, %v1411
        %1413 = vmatmul.f32.gmra.mxu0 %v1254
        %v1414 = vpop.f32.mrf.mxu0
        %v1415 = vadd.f32 0.0, %v1414
        %1416 = vmatmul.f32.gmra.mxu0 %v1257
        %v1417 = vpop.f32.mrf.mxu0
        %v1418 = vadd.f32 0.0, %v1417
        %1419 = vmatmul.f32.gmra.mxu0 %v1260
        %v1420 = vpop.f32.mrf.mxu0
        %v1421 = vadd.f32 0.0, %v1420
        %1422 = vmatmul.f32.gmra.mxu0 %v1263
        %v1423 = vpop.f32.mrf.mxu0
        %v1424 = vadd.f32 0.0, %v1423
        %1425 = vmatmul.f32.gmra.mxu0 %v1266
        %v1426 = vpop.f32.mrf.mxu0
        %v1427 = vadd.f32 0.0, %v1426
        %1428 = vmatmul.f32.gmra.mxu0 %v1269
        %v1429 = vpop.f32.mrf.mxu0
        %v1430 = vadd.f32 0.0, %v1429
        %1431 = vdwg.mxu0
        %1432 = vmatpush.msra.mxu0 0.0
        %1433 = vmatpush.msra.mxu0 0.0
        %1434 = vmatpush.msra.mxu0 0.0
        %1435 = vmatpush.msra.mxu0 0.0
        %1436 = vmatpush.msra.mxu0 0.0
        %1437 = vmatpush.msra.mxu0 0.0
        %1438 = vmatpush.msra.mxu0 0.0
        %1439 = vmatpush.msra.mxu0 0.0
        %1440 = vmatpush.msra.mxu0 %v305
        %1441 = vmatpush.msra.mxu0 %v302
        %1442 = vmatpush.msra.mxu0 %v299
        %1443 = vmatpush.msra.mxu0 %v296
        %1444 = vmatpush.msra.mxu0 %v293
        %1445 = vmatpush.msra.mxu0 %v290
        %1446 = vmatpush.msra.mxu0 %v287
        %1447 = vmatpush.msra.mxu0 %v284
        %1448 = vmatmul.f32.gmra.mxu0 %v1128
        %v1449 = vpop.f32.mrf.mxu0
        %v1450 = vadd.f32 0.0, %v1449
        %1451 = vmatmul.f32.gmra.mxu0 %v1131
        %v1452 = vpop.f32.mrf.mxu0
        %v1453 = vadd.f32 0.0, %v1452
        %1454 = vmatmul.f32.gmra.mxu0 %v1134
        %v1455 = vpop.f32.mrf.mxu0
        %v1456 = vadd.f32 0.0, %v1455
        %1457 = vmatmul.f32.gmra.mxu0 %v1137
        %v1458 = vpop.f32.mrf.mxu0
        %v1459 = vadd.f32 0.0, %v1458
        %1460 = vmatmul.f32.gmra.mxu0 %v1140
        %v1461 = vpop.f32.mrf.mxu0
        %v1462 = vadd.f32 0.0, %v1461
        %1463 = vmatmul.f32.gmra.mxu0 %v1143
        %v1464 = vpop.f32.mrf.mxu0
        %v1465 = vadd.f32 0.0, %v1464
        %1466 = vmatmul.f32.gmra.mxu0 %v1146
        %v1467 = vpop.f32.mrf.mxu0
        %v1468 = vadd.f32 0.0, %v1467
        %1469 = vmatmul.f32.gmra.mxu0 %v1149
        %v1470 = vpop.f32.mrf.mxu0
        %v1471 = vadd.f32 0.0, %v1470
        %1472 = vmatmul.f32.gmra.mxu0 %v1152
        %v1473 = vpop.f32.mrf.mxu0
        %v1474 = vadd.f32 0.0, %v1473
        %1475 = vmatmul.f32.gmra.mxu0 %v1155
        %v1476 = vpop.f32.mrf.mxu0
        %v1477 = vadd.f32 0.0, %v1476
        %1478 = vmatmul.f32.gmra.mxu0 %v1158
        %v1479 = vpop.f32.mrf.mxu0
        %v1480 = vadd.f32 0.0, %v1479
        %1481 = vmatmul.f32.gmra.mxu0 %v1161
        %v1482 = vpop.f32.mrf.mxu0
        %v1483 = vadd.f32 0.0, %v1482
        %1484 = vmatmul.f32.gmra.mxu0 %v1164
        %v1485 = vpop.f32.mrf.mxu0
        %v1486 = vadd.f32 0.0, %v1485
        %1487 = vmatmul.f32.gmra.mxu0 %v1167
        %v1488 = vpop.f32.mrf.mxu0
        %v1489 = vadd.f32 0.0, %v1488
        %1490 = vmatmul.f32.gmra.mxu0 %v1170
        %v1491 = vpop.f32.mrf.mxu0
        %v1492 = vadd.f32 0.0, %v1491
        %1493 = vmatmul.f32.gmra.mxu0 %v1173
        %v1494 = vpop.f32.mrf.mxu0
        %v1495 = vadd.f32 0.0, %v1494
        %1496 = vmatmul.f32.gmra.mxu0 %v1176
        %v1497 = vpop.f32.mrf.mxu0
        %v1498 = vadd.f32 0.0, %v1497
        %1499 = vmatmul.f32.gmra.mxu0 %v1179
        %v1500 = vpop.f32.mrf.mxu0
        %v1501 = vadd.f32 0.0, %v1500
        %1502 = vmatmul.f32.gmra.mxu0 %v1182
        %v1503 = vpop.f32.mrf.mxu0
        %v1504 = vadd.f32 0.0, %v1503
        %1505 = vmatmul.f32.gmra.mxu0 %v1185
        %v1506 = vpop.f32.mrf.mxu0
        %v1507 = vadd.f32 0.0, %v1506
        %1508 = vmatmul.f32.gmra.mxu0 %v1188
        %v1509 = vpop.f32.mrf.mxu0
        %v1510 = vadd.f32 0.0, %v1509
        %1511 = vmatmul.f32.gmra.mxu0 %v1191
        %v1512 = vpop.f32.mrf.mxu0
        %v1513 = vadd.f32 0.0, %v1512
        %1514 = vmatmul.f32.gmra.mxu0 %v1194
        %v1515 = vpop.f32.mrf.mxu0
        %v1516 = vadd.f32 0.0, %v1515
        %1517 = vmatmul.f32.gmra.mxu0 %v1197
        %v1518 = vpop.f32.mrf.mxu0
        %v1519 = vadd.f32 0.0, %v1518
        %1520 = vmatmul.f32.gmra.mxu0 %v1200
        %v1521 = vpop.f32.mrf.mxu0
        %v1522 = vadd.f32 0.0, %v1521
        %1523 = vmatmul.f32.gmra.mxu0 %v1203
        %v1524 = vpop.f32.mrf.mxu0
        %v1525 = vadd.f32 0.0, %v1524
        %1526 = vmatmul.f32.gmra.mxu0 %v1206
        %v1527 = vpop.f32.mrf.mxu0
        %v1528 = vadd.f32 0.0, %v1527
        %1529 = vmatmul.f32.gmra.mxu0 %v1209
        %v1530 = vpop.f32.mrf.mxu0
        %v1531 = vadd.f32 0.0, %v1530
        %1532 = vmatmul.f32.gmra.mxu0 %v1212
        %v1533 = vpop.f32.mrf.mxu0
        %v1534 = vadd.f32 0.0, %v1533
        %1535 = vmatmul.f32.gmra.mxu0 %v1215
        %v1536 = vpop.f32.mrf.mxu0
        %v1537 = vadd.f32 0.0, %v1536
        %1538 = vmatmul.f32.gmra.mxu0 %v1218
        %v1539 = vpop.f32.mrf.mxu0
        %v1540 = vadd.f32 0.0, %v1539
        %1541 = vmatmul.f32.gmra.mxu0 %v1221
        %v1542 = vpop.f32.mrf.mxu0
        %v1543 = vadd.f32 0.0, %v1542
        %1544 = vmatmul.f32.gmra.mxu0 %v1224
        %v1545 = vpop.f32.mrf.mxu0
        %v1546 = vadd.f32 0.0, %v1545
        %1547 = vmatmul.f32.gmra.mxu0 %v1227
        %v1548 = vpop.f32.mrf.mxu0
        %v1549 = vadd.f32 0.0, %v1548
        %1550 = vmatmul.f32.gmra.mxu0 %v1230
        %v1551 = vpop.f32.mrf.mxu0
        %v1552 = vadd.f32 0.0, %v1551
        %1553 = vmatmul.f32.gmra.mxu0 %v1233
        %v1554 = vpop.f32.mrf.mxu0
        %v1555 = vadd.f32 0.0, %v1554
        %1556 = vmatmul.f32.gmra.mxu0 %v1236
        %v1557 = vpop.f32.mrf.mxu0
        %v1558 = vadd.f32 0.0, %v1557
        %1559 = vmatmul.f32.gmra.mxu0 %v1239
        %v1560 = vpop.f32.mrf.mxu0
        %v1561 = vadd.f32 0.0, %v1560
        %1562 = vmatmul.f32.gmra.mxu0 %v1242
        %v1563 = vpop.f32.mrf.mxu0
        %v1564 = vadd.f32 0.0, %v1563
        %1565 = vmatmul.f32.gmra.mxu0 %v1245
        %v1566 = vpop.f32.mrf.mxu0
        %v1567 = vadd.f32 0.0, %v1566
        %1568 = vmatmul.f32.gmra.mxu0 %v1248
        %v1569 = vpop.f32.mrf.mxu0
        %v1570 = vadd.f32 0.0, %v1569
        %1571 = vmatmul.f32.gmra.mxu0 %v1251
        %v1572 = vpop.f32.mrf.mxu0
        %v1573 = vadd.f32 0.0, %v1572
        %1574 = vmatmul.f32.gmra.mxu0 %v1254
        %v1575 = vpop.f32.mrf.mxu0
        %v1576 = vadd.f32 0.0, %v1575
        %1577 = vmatmul.f32.gmra.mxu0 %v1257
        %v1578 = vpop.f32.mrf.mxu0
        %v1579 = vadd.f32 0.0, %v1578
        %1580 = vmatmul.f32.gmra.mxu0 %v1260
        %v1581 = vpop.f32.mrf.mxu0
        %v1582 = vadd.f32 0.0, %v1581
        %1583 = vmatmul.f32.gmra.mxu0 %v1263
        %v1584 = vpop.f32.mrf.mxu0
        %v1585 = vadd.f32 0.0, %v1584
        %1586 = vmatmul.f32.gmra.mxu0 %v1266
        %v1587 = vpop.f32.mrf.mxu0
        %v1588 = vadd.f32 0.0, %v1587
        %1589 = vmatmul.f32.gmra.mxu0 %v1269
        %v1590 = vpop.f32.mrf.mxu0
        %v1591 = vadd.f32 0.0, %v1590
        %1592 = vdwg.mxu0
        %1593 = vmatpush.msra.mxu0 0.0
        %1594 = vmatpush.msra.mxu0 0.0
        %1595 = vmatpush.msra.mxu0 0.0
        %1596 = vmatpush.msra.mxu0 0.0
        %1597 = vmatpush.msra.mxu0 0.0
        %1598 = vmatpush.msra.mxu0 0.0
        %1599 = vmatpush.msra.mxu0 0.0
        %1600 = vmatpush.msra.mxu0 0.0
        %1601 = vmatpush.msra.mxu0 %v306
        %1602 = vmatpush.msra.mxu0 %v303
        %1603 = vmatpush.msra.mxu0 %v300
        %1604 = vmatpush.msra.mxu0 %v297
        %1605 = vmatpush.msra.mxu0 %v294
        %1606 = vmatpush.msra.mxu0 %v291
        %1607 = vmatpush.msra.mxu0 %v288
        %1608 = vmatpush.msra.mxu0 %v285
        %1609 = vmatmul.f32.gmra.mxu0 %v1128
        %v1610 = vpop.f32.mrf.mxu0
        %v1611 = vadd.f32 0.0, %v1610
        %1612 = vmatmul.f32.gmra.mxu0 %v1131
        %v1613 = vpop.f32.mrf.mxu0
        %v1614 = vadd.f32 0.0, %v1613
        %1615 = vmatmul.f32.gmra.mxu0 %v1134
        %v1616 = vpop.f32.mrf.mxu0
        %v1617 = vadd.f32 0.0, %v1616
        %1618 = vmatmul.f32.gmra.mxu0 %v1137
        %v1619 = vpop.f32.mrf.mxu0
        %v1620 = vadd.f32 0.0, %v1619
        %1621 = vmatmul.f32.gmra.mxu0 %v1140
        %v1622 = vpop.f32.mrf.mxu0
        %v1623 = vadd.f32 0.0, %v1622
        %1624 = vmatmul.f32.gmra.mxu0 %v1143
        %v1625 = vpop.f32.mrf.mxu0
        %v1626 = vadd.f32 0.0, %v1625
        %1627 = vmatmul.f32.gmra.mxu0 %v1146
        %v1628 = vpop.f32.mrf.mxu0
        %v1629 = vadd.f32 0.0, %v1628
        %1630 = vmatmul.f32.gmra.mxu0 %v1149
        %v1631 = vpop.f32.mrf.mxu0
        %v1632 = vadd.f32 0.0, %v1631
        %1633 = vmatmul.f32.gmra.mxu0 %v1152
        %v1634 = vpop.f32.mrf.mxu0
        %v1635 = vadd.f32 0.0, %v1634
        %1636 = vmatmul.f32.gmra.mxu0 %v1155
        %v1637 = vpop.f32.mrf.mxu0
        %v1638 = vadd.f32 0.0, %v1637
        %1639 = vmatmul.f32.gmra.mxu0 %v1158
        %v1640 = vpop.f32.mrf.mxu0
        %v1641 = vadd.f32 0.0, %v1640
        %1642 = vmatmul.f32.gmra.mxu0 %v1161
        %v1643 = vpop.f32.mrf.mxu0
        %v1644 = vadd.f32 0.0, %v1643
        %1645 = vmatmul.f32.gmra.mxu0 %v1164
        %v1646 = vpop.f32.mrf.mxu0
        %v1647 = vadd.f32 0.0, %v1646
        %1648 = vmatmul.f32.gmra.mxu0 %v1167
        %v1649 = vpop.f32.mrf.mxu0
        %v1650 = vadd.f32 0.0, %v1649
        %1651 = vmatmul.f32.gmra.mxu0 %v1170
        %v1652 = vpop.f32.mrf.mxu0
        %v1653 = vadd.f32 0.0, %v1652
        %1654 = vmatmul.f32.gmra.mxu0 %v1173
        %v1655 = vpop.f32.mrf.mxu0
        %v1656 = vadd.f32 0.0, %v1655
        %1657 = vmatmul.f32.gmra.mxu0 %v1176
        %v1658 = vpop.f32.mrf.mxu0
        %v1659 = vadd.f32 0.0, %v1658
        %1660 = vmatmul.f32.gmra.mxu0 %v1179
        %v1661 = vpop.f32.mrf.mxu0
        %v1662 = vadd.f32 0.0, %v1661
        %1663 = vmatmul.f32.gmra.mxu0 %v1182
        %v1664 = vpop.f32.mrf.mxu0
        %v1665 = vadd.f32 0.0, %v1664
        %1666 = vmatmul.f32.gmra.mxu0 %v1185
        %v1667 = vpop.f32.mrf.mxu0
        %v1668 = vadd.f32 0.0, %v1667
        %1669 = vmatmul.f32.gmra.mxu0 %v1188
        %v1670 = vpop.f32.mrf.mxu0
        %v1671 = vadd.f32 0.0, %v1670
        %1672 = vmatmul.f32.gmra.mxu0 %v1191
        %v1673 = vpop.f32.mrf.mxu0
        %v1674 = vadd.f32 0.0, %v1673
        %1675 = vmatmul.f32.gmra.mxu0 %v1194
        %v1676 = vpop.f32.mrf.mxu0
        %v1677 = vadd.f32 0.0, %v1676
        %1678 = vmatmul.f32.gmra.mxu0 %v1197
        %v1679 = vpop.f32.mrf.mxu0
        %v1680 = vadd.f32 0.0, %v1679
        %1681 = vmatmul.f32.gmra.mxu0 %v1200
        %v1682 = vpop.f32.mrf.mxu0
        %v1683 = vadd.f32 0.0, %v1682
        %1684 = vmatmul.f32.gmra.mxu0 %v1203
        %v1685 = vpop.f32.mrf.mxu0
        %v1686 = vadd.f32 0.0, %v1685
        %1687 = vmatmul.f32.gmra.mxu0 %v1206
        %v1688 = vpop.f32.mrf.mxu0
        %v1689 = vadd.f32 0.0, %v1688
        %1690 = vmatmul.f32.gmra.mxu0 %v1209
        %v1691 = vpop.f32.mrf.mxu0
        %v1692 = vadd.f32 0.0, %v1691
        %1693 = vmatmul.f32.gmra.mxu0 %v1212
        %v1694 = vpop.f32.mrf.mxu0
        %v1695 = vadd.f32 0.0, %v1694
        %1696 = vmatmul.f32.gmra.mxu0 %v1215
        %v1697 = vpop.f32.mrf.mxu0
        %v1698 = vadd.f32 0.0, %v1697
        %1699 = vmatmul.f32.gmra.mxu0 %v1218
        %v1700 = vpop.f32.mrf.mxu0
        %v1701 = vadd.f32 0.0, %v1700
        %1702 = vmatmul.f32.gmra.mxu0 %v1221
        %v1703 = vpop.f32.mrf.mxu0
        %v1704 = vadd.f32 0.0, %v1703
        %1705 = vmatmul.f32.gmra.mxu0 %v1224
        %v1706 = vpop.f32.mrf.mxu0
        %v1707 = vadd.f32 0.0, %v1706
        %1708 = vmatmul.f32.gmra.mxu0 %v1227
        %v1709 = vpop.f32.mrf.mxu0
        %v1710 = vadd.f32 0.0, %v1709
        %1711 = vmatmul.f32.gmra.mxu0 %v1230
        %v1712 = vpop.f32.mrf.mxu0
        %v1713 = vadd.f32 0.0, %v1712
        %1714 = vmatmul.f32.gmra.mxu0 %v1233
        %v1715 = vpop.f32.mrf.mxu0
        %v1716 = vadd.f32 0.0, %v1715
        %1717 = vmatmul.f32.gmra.mxu0 %v1236
        %v1718 = vpop.f32.mrf.mxu0
        %v1719 = vadd.f32 0.0, %v1718
        %1720 = vmatmul.f32.gmra.mxu0 %v1239
        %v1721 = vpop.f32.mrf.mxu0
        %v1722 = vadd.f32 0.0, %v1721
        %1723 = vmatmul.f32.gmra.mxu0 %v1242
        %v1724 = vpop.f32.mrf.mxu0
        %v1725 = vadd.f32 0.0, %v1724
        %1726 = vmatmul.f32.gmra.mxu0 %v1245
        %v1727 = vpop.f32.mrf.mxu0
        %v1728 = vadd.f32 0.0, %v1727
        %1729 = vmatmul.f32.gmra.mxu0 %v1248
        %v1730 = vpop.f32.mrf.mxu0
        %v1731 = vadd.f32 0.0, %v1730
        %1732 = vmatmul.f32.gmra.mxu0 %v1251
        %v1733 = vpop.f32.mrf.mxu0
        %v1734 = vadd.f32 0.0, %v1733
        %1735 = vmatmul.f32.gmra.mxu0 %v1254
        %v1736 = vpop.f32.mrf.mxu0
        %v1737 = vadd.f32 0.0, %v1736
        %1738 = vmatmul.f32.gmra.mxu0 %v1257
        %v1739 = vpop.f32.mrf.mxu0
        %v1740 = vadd.f32 0.0, %v1739
        %1741 = vmatmul.f32.gmra.mxu0 %v1260
        %v1742 = vpop.f32.mrf.mxu0
        %v1743 = vadd.f32 0.0, %v1742
        %1744 = vmatmul.f32.gmra.mxu0 %v1263
        %v1745 = vpop.f32.mrf.mxu0
        %v1746 = vadd.f32 0.0, %v1745
        %1747 = vmatmul.f32.gmra.mxu0 %v1266
        %v1748 = vpop.f32.mrf.mxu0
        %v1749 = vadd.f32 0.0, %v1748
        %1750 = vmatmul.f32.gmra.mxu0 %v1269
        %v1751 = vpop.f32.mrf.mxu0
        %v1752 = vadd.f32 0.0, %v1751
        %1753 = vdwg.mxu0
        %1754 = vst [vmem:[%s207] sm:$0xff] %v566
        %1755 = vst [vmem:[%s207 + $0x8] sm:$0xff] %v727
        %1756 = vst [vmem:[%s207 + $0x10] sm:$0xff] %v888
        %1757 = vst [vmem:[%s207 + $0x18] sm:$0xff] %v569
        %1758 = vst [vmem:[%s207 + $0x20] sm:$0xff] %v730
        %1759 = vst [vmem:[%s207 + $0x28] sm:$0xff] %v891
        %1760 = vst [vmem:[%s207 + $0x30] sm:$0xff] %v572
        %1761 = vst [vmem:[%s207 + $0x38] sm:$0xff] %v733
        %1762 = vst [vmem:[%s207 + $0x40] sm:$0xff] %v894
        %1763 = vst [vmem:[%s207 + $0x48] sm:$0xff] %v575
        %1764 = vst [vmem:[%s207 + $0x50] sm:$0xff] %v736
        %1765 = vst [vmem:[%s207 + $0x58] sm:$0xff] %v897
        %1766 = vst [vmem:[%s207 + $0x60] sm:$0xff] %v578
        %1767 = vst [vmem:[%s207 + $0x68] sm:$0xff] %v739
        %1768 = vst [vmem:[%s207 + $0x70] sm:$0xff] %v900
        %1769 = vst [vmem:[%s207 + $0x78] sm:$0xff] %v581
        %1770 = vst [vmem:[%s207 + $0x80] sm:$0xff] %v742
        %1771 = vst [vmem:[%s207 + $0x88] sm:$0xff] %v903
        %1772 = vst [vmem:[%s207 + $0x90] sm:$0xff] %v584
        %1773 = vst [vmem:[%s207 + $0x98] sm:$0xff] %v745
        %1774 = vst [vmem:[%s207 + $0xa0] sm:$0xff] %v906
        %1775 = vst [vmem:[%s207 + $0xa8] sm:$0xff] %v587
        %1776 = vst [vmem:[%s207 + $0xb0] sm:$0xff] %v748
        %1777 = vst [vmem:[%s207 + $0xb8] sm:$0xff] %v909
        %1778 = vst [vmem:[%s207 + $0xc0] sm:$0xff] %v590
        %1779 = vst [vmem:[%s207 + $0xc8] sm:$0xff] %v751
        %1780 = vst [vmem:[%s207 + $0xd0] sm:$0xff] %v912
        %1781 = vst [vmem:[%s207 + $0xd8] sm:$0xff] %v593
        %1782 = vst [vmem:[%s207 + $0xe0] sm:$0xff] %v754
        %1783 = vst [vmem:[%s207 + $0xe8] sm:$0xff] %v915
        %1784 = vst [vmem:[%s207 + $0xf0] sm:$0xff] %v596
        %1785 = vst [vmem:[%s207 + $0xf8] sm:$0xff] %v757
        %1786 = vst [vmem:[%s207 + $0x100] sm:$0xff] %v918
        %1787 = vst [vmem:[%s207 + $0x108] sm:$0xff] %v599
        %1788 = vst [vmem:[%s207 + $0x110] sm:$0xff] %v760
        %1789 = vst [vmem:[%s207 + $0x118] sm:$0xff] %v921
        %1790 = vst [vmem:[%s207 + $0x120] sm:$0xff] %v602
        %1791 = vst [vmem:[%s207 + $0x128] sm:$0xff] %v763
        %1792 = vst [vmem:[%s207 + $0x130] sm:$0xff] %v924
        %1793 = vst [vmem:[%s207 + $0x138] sm:$0xff] %v605
        %1794 = vst [vmem:[%s207 + $0x140] sm:$0xff] %v766
        %1795 = vst [vmem:[%s207 + $0x148] sm:$0xff] %v927
        %1796 = vst [vmem:[%s207 + $0x150] sm:$0xff] %v608
        %1797 = vst [vmem:[%s207 + $0x158] sm:$0xff] %v769
        %1798 = vst [vmem:[%s207 + $0x160] sm:$0xff] %v930
        %1799 = vst [vmem:[%s207 + $0x168] sm:$0xff] %v611
        %1800 = vst [vmem:[%s207 + $0x170] sm:$0xff] %v772
        %1801 = vst [vmem:[%s207 + $0x178] sm:$0xff] %v933
        %1802 = vst [vmem:[%s207 + $0x180] sm:$0xff] %v614
        %1803 = vst [vmem:[%s207 + $0x188] sm:$0xff] %v775
        %1804 = vst [vmem:[%s207 + $0x190] sm:$0xff] %v936
        %1805 = vst [vmem:[%s207 + $0x198] sm:$0xff] %v617
        %1806 = vst [vmem:[%s207 + $0x1a0] sm:$0xff] %v778
        %1807 = vst [vmem:[%s207 + $0x1a8] sm:$0xff] %v939
        %1808 = vst [vmem:[%s207 + $0x1b0] sm:$0xff] %v620
        %1809 = vst [vmem:[%s207 + $0x1b8] sm:$0xff] %v781
        %1810 = vst [vmem:[%s207 + $0x1c0] sm:$0xff] %v942
        %1811 = vst [vmem:[%s207 + $0x1c8] sm:$0xff] %v623
        %1812 = vst [vmem:[%s207 + $0x1d0] sm:$0xff] %v784
        %1813 = vst [vmem:[%s207 + $0x1d8] sm:$0xff] %v945
        %1814 = vst [vmem:[%s207 + $0x1e0] sm:$0xff] %v626
        %1815 = vst [vmem:[%s207 + $0x1e8] sm:$0xff] %v787
        %1816 = vst [vmem:[%s207 + $0x1f0] sm:$0xff] %v948
        %1817 = vst [vmem:[%s207 + $0x1f8] sm:$0xff] %v629
        %1818 = vst [vmem:[%s207 + $0x200] sm:$0xff] %v790
        %1819 = vst [vmem:[%s207 + $0x208] sm:$0xff] %v951
        %1820 = vst [vmem:[%s207 + $0x210] sm:$0xff] %v632
        %1821 = vst [vmem:[%s207 + $0x218] sm:$0xff] %v793
        %1822 = vst [vmem:[%s207 + $0x220] sm:$0xff] %v954
        %1823 = vst [vmem:[%s207 + $0x228] sm:$0xff] %v635
        %1824 = vst [vmem:[%s207 + $0x230] sm:$0xff] %v796
        %1825 = vst [vmem:[%s207 + $0x238] sm:$0xff] %v957
        %1826 = vst [vmem:[%s207 + $0x240] sm:$0xff] %v638
        %1827 = vst [vmem:[%s207 + $0x248] sm:$0xff] %v799
        %1828 = vst [vmem:[%s207 + $0x250] sm:$0xff] %v960
        %1829 = vst [vmem:[%s207 + $0x258] sm:$0xff] %v641
        %1830 = vst [vmem:[%s207 + $0x260] sm:$0xff] %v802
        %1831 = vst [vmem:[%s207 + $0x268] sm:$0xff] %v963
        %1832 = vst [vmem:[%s207 + $0x270] sm:$0xff] %v644
        %1833 = vst [vmem:[%s207 + $0x278] sm:$0xff] %v805
        %1834 = vst [vmem:[%s207 + $0x280] sm:$0xff] %v966
        %1835 = vst [vmem:[%s207 + $0x288] sm:$0xff] %v647
        %1836 = vst [vmem:[%s207 + $0x290] sm:$0xff] %v808
        %1837 = vst [vmem:[%s207 + $0x298] sm:$0xff] %v969
        %1838 = vst [vmem:[%s207 + $0x2a0] sm:$0xff] %v650
        %1839 = vst [vmem:[%s207 + $0x2a8] sm:$0xff] %v811
        %1840 = vst [vmem:[%s207 + $0x2b0] sm:$0xff] %v972
        %1841 = vst [vmem:[%s207 + $0x2b8] sm:$0xff] %v653
        %1842 = vst [vmem:[%s207 + $0x2c0] sm:$0xff] %v814
        %1843 = vst [vmem:[%s207 + $0x2c8] sm:$0xff] %v975
        %1844 = vst [vmem:[%s207 + $0x2d0] sm:$0xff] %v656
        %1845 = vst [vmem:[%s207 + $0x2d8] sm:$0xff] %v817
        %1846 = vst [vmem:[%s207 + $0x2e0] sm:$0xff] %v978
        %1847 = vst [vmem:[%s207 + $0x2e8] sm:$0xff] %v659
        %1848 = vst [vmem:[%s207 + $0x2f0] sm:$0xff] %v820
        %1849 = vst [vmem:[%s207 + $0x2f8] sm:$0xff] %v981
        %1850 = vst [vmem:[%s207 + $0x300] sm:$0xff] %v662
        %1851 = vst [vmem:[%s207 + $0x308] sm:$0xff] %v823
        %1852 = vst [vmem:[%s207 + $0x310] sm:$0xff] %v984
        %1853 = vst [vmem:[%s207 + $0x318] sm:$0xff] %v665
        %1854 = vst [vmem:[%s207 + $0x320] sm:$0xff] %v826
        %1855 = vst [vmem:[%s207 + $0x328] sm:$0xff] %v987
        %1856 = vst [vmem:[%s207 + $0x330] sm:$0xff] %v668
        %1857 = vst [vmem:[%s207 + $0x338] sm:$0xff] %v829
        %1858 = vst [vmem:[%s207 + $0x340] sm:$0xff] %v990
        %1859 = vst [vmem:[%s207 + $0x348] sm:$0xff] %v671
        %1860 = vst [vmem:[%s207 + $0x350] sm:$0xff] %v832
        %1861 = vst [vmem:[%s207 + $0x358] sm:$0xff] %v993
        %1862 = vst [vmem:[%s207 + $0x360] sm:$0xff] %v674
        %1863 = vst [vmem:[%s207 + $0x368] sm:$0xff] %v835
        %1864 = vst [vmem:[%s207 + $0x370] sm:$0xff] %v996
        %1865 = vst [vmem:[%s207 + $0x378] sm:$0xff] %v677
        %1866 = vst [vmem:[%s207 + $0x380] sm:$0xff] %v838
        %1867 = vst [vmem:[%s207 + $0x388] sm:$0xff] %v999
        %1868 = vst [vmem:[%s207 + $0x390] sm:$0xff] %v680
        %1869 = vst [vmem:[%s207 + $0x398] sm:$0xff] %v841
        %1870 = vst [vmem:[%s207 + $0x3a0] sm:$0xff] %v1002
        %1871 = vst [vmem:[%s207 + $0x3a8] sm:$0xff] %v683
        %1872 = vst [vmem:[%s207 + $0x3b0] sm:$0xff] %v844
        %1873 = vst [vmem:[%s207 + $0x3b8] sm:$0xff] %v1005
        %1874 = vst [vmem:[%s207 + $0x3c0] sm:$0xff] %v686
        %1875 = vst [vmem:[%s207 + $0x3c8] sm:$0xff] %v847
        %1876 = vst [vmem:[%s207 + $0x3d0] sm:$0xff] %v1008
        %1877 = vst [vmem:[%s207 + $0x3d8] sm:$0xff] %v689
        %1878 = vst [vmem:[%s207 + $0x3e0] sm:$0xff] %v850
        %1879 = vst [vmem:[%s207 + $0x3e8] sm:$0xff] %v1011
        %1880 = vst [vmem:[%s207 + $0x3f0] sm:$0xff] %v692
        %1881 = vst [vmem:[%s207 + $0x3f8] sm:$0xff] %v853
        %1882 = vst [vmem:[%s207 + $0x400] sm:$0xff] %v1014
        %1883 = vst [vmem:[%s207 + $0x408] sm:$0xff] %v695
        %1884 = vst [vmem:[%s207 + $0x410] sm:$0xff] %v856
        %1885 = vst [vmem:[%s207 + $0x418] sm:$0xff] %v1017
        %1886 = vst [vmem:[%s207 + $0x420] sm:$0xff] %v698
        %1887 = vst [vmem:[%s207 + $0x428] sm:$0xff] %v859
        %1888 = vst [vmem:[%s207 + $0x430] sm:$0xff] %v1020
        %1889 = vst [vmem:[%s207 + $0x438] sm:$0xff] %v701
        %1890 = vst [vmem:[%s207 + $0x440] sm:$0xff] %v862
        %1891 = vst [vmem:[%s207 + $0x448] sm:$0xff] %v1023
        %1892 = vst [vmem:[%s207 + $0x450] sm:$0xff] %v704
        %1893 = vst [vmem:[%s207 + $0x458] sm:$0xff] %v865
        %1894 = vst [vmem:[%s207 + $0x460] sm:$0xff] %v1026
        %1895 = vst [vmem:[%s207 + $0x468] sm:$0xff] %v707
        %1896 = vst [vmem:[%s207 + $0x470] sm:$0xff] %v868
        %1897 = vst [vmem:[%s207 + $0x478] sm:$0xff] %v1029
        %1898 = vst [vmem:[%s207 + $0x480] sm:$0xff] %v1289
        %1899 = vst [vmem:[%s207 + $0x488] sm:$0xff] %v1450
        %1900 = vst [vmem:[%s207 + $0x490] sm:$0xff] %v1611
        %1901 = vst [vmem:[%s207 + $0x498] sm:$0xff] %v1292
        %1902 = vst [vmem:[%s207 + $0x4a0] sm:$0xff] %v1453
        %1903 = vst [vmem:[%s207 + $0x4a8] sm:$0xff] %v1614
        %1904 = vst [vmem:[%s207 + $0x4b0] sm:$0xff] %v1295
        %1905 = vst [vmem:[%s207 + $0x4b8] sm:$0xff] %v1456
        %1906 = vst [vmem:[%s207 + $0x4c0] sm:$0xff] %v1617
        %1907 = vst [vmem:[%s207 + $0x4c8] sm:$0xff] %v1298
        %1908 = vst [vmem:[%s207 + $0x4d0] sm:$0xff] %v1459
        %1909 = vst [vmem:[%s207 + $0x4d8] sm:$0xff] %v1620
        %1910 = vst [vmem:[%s207 + $0x4e0] sm:$0xff] %v1301
        %1911 = vst [vmem:[%s207 + $0x4e8] sm:$0xff] %v1462
        %1912 = vst [vmem:[%s207 + $0x4f0] sm:$0xff] %v1623
        %1913 = vst [vmem:[%s207 + $0x4f8] sm:$0xff] %v1304
        %1914 = vst [vmem:[%s207 + $0x500] sm:$0xff] %v1465
        %1915 = vst [vmem:[%s207 + $0x508] sm:$0xff] %v1626
        %1916 = vst [vmem:[%s207 + $0x510] sm:$0xff] %v1307
        %1917 = vst [vmem:[%s207 + $0x518] sm:$0xff] %v1468
        %1918 = vst [vmem:[%s207 + $0x520] sm:$0xff] %v1629
        %1919 = vst [vmem:[%s207 + $0x528] sm:$0xff] %v1310
        %1920 = vst [vmem:[%s207 + $0x530] sm:$0xff] %v1471
        %1921 = vst [vmem:[%s207 + $0x538] sm:$0xff] %v1632
        %1922 = vst [vmem:[%s207 + $0x540] sm:$0xff] %v1313
        %1923 = vst [vmem:[%s207 + $0x548] sm:$0xff] %v1474
        %1924 = vst [vmem:[%s207 + $0x550] sm:$0xff] %v1635
        %1925 = vst [vmem:[%s207 + $0x558] sm:$0xff] %v1316
        %1926 = vst [vmem:[%s207 + $0x560] sm:$0xff] %v1477
        %1927 = vst [vmem:[%s207 + $0x568] sm:$0xff] %v1638
        %1928 = vst [vmem:[%s207 + $0x570] sm:$0xff] %v1319
        %1929 = vst [vmem:[%s207 + $0x578] sm:$0xff] %v1480
        %1930 = vst [vmem:[%s207 + $0x580] sm:$0xff] %v1641
        %1931 = vst [vmem:[%s207 + $0x588] sm:$0xff] %v1322
        %1932 = vst [vmem:[%s207 + $0x590] sm:$0xff] %v1483
        %1933 = vst [vmem:[%s207 + $0x598] sm:$0xff] %v1644
        %1934 = vst [vmem:[%s207 + $0x5a0] sm:$0xff] %v1325
        %1935 = vst [vmem:[%s207 + $0x5a8] sm:$0xff] %v1486
        %1936 = vst [vmem:[%s207 + $0x5b0] sm:$0xff] %v1647
        %1937 = vst [vmem:[%s207 + $0x5b8] sm:$0xff] %v1328
        %1938 = vst [vmem:[%s207 + $0x5c0] sm:$0xff] %v1489
        %1939 = vst [vmem:[%s207 + $0x5c8] sm:$0xff] %v1650
        %1940 = vst [vmem:[%s207 + $0x5d0] sm:$0xff] %v1331
        %1941 = vst [vmem:[%s207 + $0x5d8] sm:$0xff] %v1492
        %1942 = vst [vmem:[%s207 + $0x5e0] sm:$0xff] %v1653
        %1943 = vst [vmem:[%s207 + $0x5e8] sm:$0xff] %v1334
        %1944 = vst [vmem:[%s207 + $0x5f0] sm:$0xff] %v1495
        %1945 = vst [vmem:[%s207 + $0x5f8] sm:$0xff] %v1656
        %1946 = vst [vmem:[%s207 + $0x600] sm:$0xff] %v1337
        %1947 = vst [vmem:[%s207 + $0x608] sm:$0xff] %v1498
        %1948 = vst [vmem:[%s207 + $0x610] sm:$0xff] %v1659
        %1949 = vst [vmem:[%s207 + $0x618] sm:$0xff] %v1340
        %1950 = vst [vmem:[%s207 + $0x620] sm:$0xff] %v1501
        %1951 = vst [vmem:[%s207 + $0x628] sm:$0xff] %v1662
        %1952 = vst [vmem:[%s207 + $0x630] sm:$0xff] %v1343
        %1953 = vst [vmem:[%s207 + $0x638] sm:$0xff] %v1504
        %1954 = vst [vmem:[%s207 + $0x640] sm:$0xff] %v1665
        %1955 = vst [vmem:[%s207 + $0x648] sm:$0xff] %v1346
        %1956 = vst [vmem:[%s207 + $0x650] sm:$0xff] %v1507
        %1957 = vst [vmem:[%s207 + $0x658] sm:$0xff] %v1668
        %1958 = vst [vmem:[%s207 + $0x660] sm:$0xff] %v1349
        %1959 = vst [vmem:[%s207 + $0x668] sm:$0xff] %v1510
        %1960 = vst [vmem:[%s207 + $0x670] sm:$0xff] %v1671
        %1961 = vst [vmem:[%s207 + $0x678] sm:$0xff] %v1352
        %1962 = vst [vmem:[%s207 + $0x680] sm:$0xff] %v1513
        %1963 = vst [vmem:[%s207 + $0x688] sm:$0xff] %v1674
        %1964 = vst [vmem:[%s207 + $0x690] sm:$0xff] %v1355
        %1965 = vst [vmem:[%s207 + $0x698] sm:$0xff] %v1516
        %1966 = vst [vmem:[%s207 + $0x6a0] sm:$0xff] %v1677
        %1967 = vst [vmem:[%s207 + $0x6a8] sm:$0xff] %v1358
        %1968 = vst [vmem:[%s207 + $0x6b0] sm:$0xff] %v1519
        %1969 = vst [vmem:[%s207 + $0x6b8] sm:$0xff] %v1680
        %1970 = vst [vmem:[%s207 + $0x6c0] sm:$0xff] %v1361
        %1971 = vst [vmem:[%s207 + $0x6c8] sm:$0xff] %v1522
        %1972 = vst [vmem:[%s207 + $0x6d0] sm:$0xff] %v1683
        %1973 = vst [vmem:[%s207 + $0x6d8] sm:$0xff] %v1364
        %1974 = vst [vmem:[%s207 + $0x6e0] sm:$0xff] %v1525
        %1975 = vst [vmem:[%s207 + $0x6e8] sm:$0xff] %v1686
        %1976 = vst [vmem:[%s207 + $0x6f0] sm:$0xff] %v1367
        %1977 = vst [vmem:[%s207 + $0x6f8] sm:$0xff] %v1528
        %1978 = vst [vmem:[%s207 + $0x700] sm:$0xff] %v1689
        %1979 = vst [vmem:[%s207 + $0x708] sm:$0xff] %v1370
        %1980 = vst [vmem:[%s207 + $0x710] sm:$0xff] %v1531
        %1981 = vst [vmem:[%s207 + $0x718] sm:$0xff] %v1692
        %1982 = vst [vmem:[%s207 + $0x720] sm:$0xff] %v1373
        %1983 = vst [vmem:[%s207 + $0x728] sm:$0xff] %v1534
        %1984 = vst [vmem:[%s207 + $0x730] sm:$0xff] %v1695
        %1985 = vst [vmem:[%s207 + $0x738] sm:$0xff] %v1376
        %1986 = vst [vmem:[%s207 + $0x740] sm:$0xff] %v1537
        %1987 = vst [vmem:[%s207 + $0x748] sm:$0xff] %v1698
        %1988 = vst [vmem:[%s207 + $0x750] sm:$0xff] %v1379
        %1989 = vst [vmem:[%s207 + $0x758] sm:$0xff] %v1540
        %1990 = vst [vmem:[%s207 + $0x760] sm:$0xff] %v1701
        %1991 = vst [vmem:[%s207 + $0x768] sm:$0xff] %v1382
        %1992 = vst [vmem:[%s207 + $0x770] sm:$0xff] %v1543
        %1993 = vst [vmem:[%s207 + $0x778] sm:$0xff] %v1704
        %1994 = vst [vmem:[%s207 + $0x780] sm:$0xff] %v1385
        %1995 = vst [vmem:[%s207 + $0x788] sm:$0xff] %v1546
        %1996 = vst [vmem:[%s207 + $0x790] sm:$0xff] %v1707
        %1997 = vst [vmem:[%s207 + $0x798] sm:$0xff] %v1388
        %1998 = vst [vmem:[%s207 + $0x7a0] sm:$0xff] %v1549
        %1999 = vst [vmem:[%s207 + $0x7a8] sm:$0xff] %v1710
        %2000 = vst [vmem:[%s207 + $0x7b0] sm:$0xff] %v1391
        %2001 = vst [vmem:[%s207 + $0x7b8] sm:$0xff] %v1552
        %2002 = vst [vmem:[%s207 + $0x7c0] sm:$0xff] %v1713
        %2003 = vst [vmem:[%s207 + $0x7c8] sm:$0xff] %v1394
        %2004 = vst [vmem:[%s207 + $0x7d0] sm:$0xff] %v1555
        %2005 = vst [vmem:[%s207 + $0x7d8] sm:$0xff] %v1716
        %2006 = vst [vmem:[%s207 + $0x7e0] sm:$0xff] %v1397
        %2007 = vst [vmem:[%s207 + $0x7e8] sm:$0xff] %v1558
        %2008 = vst [vmem:[%s207 + $0x7f0] sm:$0xff] %v1719
        %2009 = vst [vmem:[%s207 + $0x7f8] sm:$0xff] %v1400
        %2010 = vst [vmem:[%s207 + $0x800] sm:$0xff] %v1561
        %2011 = vst [vmem:[%s207 + $0x808] sm:$0xff] %v1722
        %2012 = vst [vmem:[%s207 + $0x810] sm:$0xff] %v1403
        %2013 = vst [vmem:[%s207 + $0x818] sm:$0xff] %v1564
        %2014 = vst [vmem:[%s207 + $0x820] sm:$0xff] %v1725
        %2015 = vst [vmem:[%s207 + $0x828] sm:$0xff] %v1406
        %2016 = vst [vmem:[%s207 + $0x830] sm:$0xff] %v1567
        %2017 = vst [vmem:[%s207 + $0x838] sm:$0xff] %v1728
        %2018 = vst [vmem:[%s207 + $0x840] sm:$0xff] %v1409
        %2019 = vst [vmem:[%s207 + $0x848] sm:$0xff] %v1570
        %2020 = vst [vmem:[%s207 + $0x850] sm:$0xff] %v1731
        %2021 = vst [vmem:[%s207 + $0x858] sm:$0xff] %v1412
        %2022 = vst [vmem:[%s207 + $0x860] sm:$0xff] %v1573
        %2023 = vst [vmem:[%s207 + $0x868] sm:$0xff] %v1734
        %2024 = vst [vmem:[%s207 + $0x870] sm:$0xff] %v1415
        %2025 = vst [vmem:[%s207 + $0x878] sm:$0xff] %v1576
        %2026 = vst [vmem:[%s207 + $0x880] sm:$0xff] %v1737
        %2027 = vst [vmem:[%s207 + $0x888] sm:$0xff] %v1418
        %2028 = vst [vmem:[%s207 + $0x890] sm:$0xff] %v1579
        %2029 = vst [vmem:[%s207 + $0x898] sm:$0xff] %v1740
        %2030 = vst [vmem:[%s207 + $0x8a0] sm:$0xff] %v1421
        %2031 = vst [vmem:[%s207 + $0x8a8] sm:$0xff] %v1582
        %2032 = vst [vmem:[%s207 + $0x8b0] sm:$0xff] %v1743
        %2033 = vst [vmem:[%s207 + $0x8b8] sm:$0xff] %v1424
        %2034 = vst [vmem:[%s207 + $0x8c0] sm:$0xff] %v1585
        %2035 = vst [vmem:[%s207 + $0x8c8] sm:$0xff] %v1746
        %2036 = vst [vmem:[%s207 + $0x8d0] sm:$0xff] %v1427
        %2037 = vst [vmem:[%s207 + $0x8d8] sm:$0xff] %v1588
        %2038 = vst [vmem:[%s207 + $0x8e0] sm:$0xff] %v1749
        %2039 = vst [vmem:[%s207 + $0x8e8] sm:$0xff] %v1430
        %2040 = vst [vmem:[%s207 + $0x8f0] sm:$0xff] %v1591
        %2041 = vst [vmem:[%s207 + $0x8f8] sm:$0xff] %v1752
        %s2042 = sand.u32 %s82, 1
        %s2043 = scalar_lea.sflag [#allocation4], %s2042
        %s2044 = sand.u32 %s82, 1
        %s2045 = smul.addr %s2044, 2304
        %s2046 = scalar_lea.vmem [#allocation7], %s2045
        // Predicated region
        $region37: #{tpu_custom_call.1} parent=27 // pred_check
          %p2047 = pneg %p92
        $region38: #{tpu_custom_call.1} parent=27 // pred_check_branch
          %2049 = sbr.rel (%p2047) target = $region40
        $region39: #{tpu_custom_call.1} parent=27 // pred_region
          %s2050 = smul.u32 2, %s22
          %2052 = vsyncadd %s2043, 0
          %s2053 = smul.addr %s2050, 144
          %s2054 = smul.addr %s2053, 8
          %s2055 = scalar_lea.hbm %s2, %s2054
          %s2056 = sshll.u32 %s2046, 4
          %s2057 = int_to_ptr.vmem [resolvable:$true] %s2056
          %s2058 = sshll.u32 %s2055, 4
          %s2059 = int_to_ptr.hbm [resolvable:$true] %s2058
          %2064 = dma.vmem_to_hbm [thread:$0]  %s2057, 36864, %s2059, %s2043, 384, 384, 24
        $region40: #{tpu_custom_call.1} parent=27 // pred_fallthru
          _
      $region28: #{tpu_custom_call.1} parent=5 // pred_fallthru
        _
      %p2065 = scmp.le.s32.totalorder 2, %s17
      // Predicated region
      $region41: #{tpu_custom_call.1} parent=5 // pred_check
        %p2066 = pneg %p2065
      $region42: #{tpu_custom_call.1} parent=5 // pred_check_branch
        %2068 = sbr.rel (%p2066) target = $region44
      $region43: #{tpu_custom_call.1} parent=5 // pred_region
        %s2069 = ssub.s32 %s17, 2
        // Predicated region
        $region45: #{tpu_custom_call.1} parent=43 // pred_check
          %p2070 = pneg %p98
        $region46: #{tpu_custom_call.1} parent=43 // pred_check_branch
          %2072 = sbr.rel (%p2070) target = $region48
        $region47: #{tpu_custom_call.1} parent=43 // pred_region
          %s2073 = sand.u32 %s83, 1
          %s2074 = scalar_lea.sflag [#allocation4], %s2073
          %s2075 = sand.u32 %s83, 1
          %s2076 = smul.addr %s2075, 2304
          %s2077 = scalar_lea.vmem [#allocation7], %s2076
          %2079 = dma.done %s2074, 36864
        $region48: #{tpu_custom_call.1} parent=43 // pred_fallthru
          _
      $region44: #{tpu_custom_call.1} parent=5 // pred_fallthru
        _
    $region6: #{tpu_custom_call.1} parent=1 // loop_footer
      %s21 = sadd.s32 1, %s17
    $region7: #{tpu_custom_call.1} parent=1 // loop_footer_branch
      %16 = sbr.rel target = $region3
    $region8: #{tpu_custom_call.1} parent=1 // loop_exit
      _
    %2080 = vsyncpa [#allocation3], 1
    %s2081 = scalar_lea.sflag [#allocation3], 1
    %2082 = vsyncpa %s2081, 1
    %2083 = vsyncpa [#allocation6], 1
    %s2084 = scalar_lea.sflag [#allocation6], 1
    %2085 = vsyncpa %s2084, 1
    %2086 = vsyncpa [#allocation4], 1
    %s2087 = scalar_lea.sflag [#allocation4], 1
    %2088 = vsyncpa %s2087, 1

</llo_original>
